<compile_context>
chip_gen: v7x
topology: tpu7x:2x2x1
jax: 0.10.0
libtpu: 0.0.40
codegen_flags: <defaults>
</compile_context>

<pallas_src>
import functools

import jax
import jax.numpy as jnp
from jax.experimental import pallas as pl
from jax.experimental.pallas import tpu as pltpu


def _round_up(x, m):
    return (x + m - 1) // m * m


def _focal_term(one_minus_pt, gamma):
    """(1 - pt)**gamma with small integer gamma lowered to VALU multiplies."""
    g = float(gamma)
    if g == int(g) and 0 <= int(g) <= 4:
        gi = int(g)
        if gi == 0:
            return jnp.ones_like(one_minus_pt)
        out = one_minus_pt
        for _ in range(gi - 1):
            out = out * one_minus_pt
        return out
    # Non-integer gamma: clamp so 0**gamma never goes through exp(g*log(0)).
    return jnp.maximum(one_minus_pt, 1e-30) ** g


def focal_loss_kernel(logits_ref, targets_ref, out_ref, acc_ref, *, alpha, gamma):
    # logits_ref : (2, BLK_ROWS, BLK_LANES) native dtype -> cast to f32 in-kernel
    # targets_ref: (BLK_ROWS, BLK_LANES) int8, values {0, 1}; padded samples are
    #              target=0 with logits (+30, -30) so their loss is exactly zero
    # out_ref    : (1, 1) f32 in SMEM, written once on the last sequential step
    # acc_ref    : (1, 1) f32 SMEM scratch accumulator
    step = pl.program_id(1)

    z0 = logits_ref[0].astype(jnp.float32)
    z1 = logits_ref[1].astype(jnp.float32)
    is_one = targets_ref[...].astype(jnp.int32) == 1

    # Binary log-softmax in closed form: CE = softplus(z_other - z_target).
    # Stable softplus; plain log(1 + x) (x in [0, 1]) keeps error << 1e-6 and
    # avoids relying on a log1p lowering.
    s = z0 - z1
    d = jnp.where(is_one, s, -s)
    softplus = jnp.maximum(d, 0.0) + jnp.log(1.0 + jnp.exp(-jnp.abs(d)))

    # Per-class weight [1 - alpha, alpha][target]; weighted CE (reduction='none'),
    # matching F.cross_entropy(..., weight=alpha_vec, reduction='none').
    w = jnp.where(is_one, alpha, 1.0 - alpha)
    ce = w * softplus                     # >= 0, exactly 0 on padded samples

    pt = jnp.exp(-ce)                     # <= 1, so 1 - pt >= 0
    loss = _focal_term(1.0 - pt, gamma) * ce

    @pl.when(step == 0)
    def _init():
        acc_ref[0, 0] = 0.0

    acc_ref[0, 0] += jnp.sum(loss)

    @pl.when(step == pl.num_programs(1) - 1)
    def _finalize():
        out_ref[0, 0] = acc_ref[0, 0]


def focal_loss(logits, targets, alpha=0.25, gamma=2.0, reduction="sum",
               blk_rows=512, blk_lanes=2048, num_parallel=2):
    n, c = logits.shape
    assert c == 2, "binary focal loss (2-class logits) expected"
    if reduction not in ("sum", "mean"):
        # TODO(synk): reduction='none' (per-sample loss vector) is not exposed by
        # this fused-sum kernel.
        raise NotImplementedError("only reduction in {'sum', 'mean'} is supported")

    # Shrink the row-tile for small N so padding stays bounded; keep it a
    # multiple of 32 (satisfies int8 (32,128) / bf16 (16,128) / f32 (8,128) tiling).
    rows_needed = pl.cdiv(n, blk_lanes)
    blk_rows = max(32, min(_round_up(blk_rows, 32), _round_up(rows_needed, 32)))

    block_elems = blk_rows * blk_lanes
    num_blocks = pl.cdiv(n, block_elems)
    p_dim = num_parallel if num_blocks >= num_parallel else 1
    s_dim = pl.cdiv(num_blocks, p_dim)
    num_blocks = p_dim * s_dim
    n_pad = num_blocks * block_elems
    rows = num_blocks * blk_rows
    pad_cols = n_pad - n

    # Lane-dense, class-major relayout (layout plumbing only; compute is in-kernel):
    #   logits (N, 2) -> (2, rows, blk_lanes) in native dtype (bf16 stays bf16)
    #   targets (N,)  -> (rows, blk_lanes) int8
    # Padded samples: target=0, logits (+30, -30) => softplus(-60) == 0 exactly in
    # f32, so padded loss is exactly 0 with no per-element validity mask.
    # TODO(synk): the transpose+pad is one extra HBM pass over the inputs; fuse a
    # class-major (2, N) layout into the producing layer to remove it.
    z = jnp.transpose(logits)                                   # (2, N)
    t = targets.astype(jnp.int8)
    if pad_cols:
        fill = jnp.stack([jnp.full((pad_cols,), 30.0, dtype=logits.dtype),
                          jnp.full((pad_cols,), -30.0, dtype=logits.dtype)])
        z = jnp.concatenate([z, fill], axis=1)
        t = jnp.pad(t, (0, pad_cols))                           # padded target = 0
    z = z.reshape(2, rows, blk_lanes)
    t = t.reshape(rows, blk_lanes)

    kernel = functools.partial(focal_loss_kernel,
                               alpha=float(alpha), gamma=float(gamma))

    partials = pl.pallas_call(
        kernel,
        out_shape=jax.ShapeDtypeStruct((p_dim, 1), jnp.float32),
        grid=(p_dim, s_dim),
        in_specs=[
            pl.BlockSpec((2, blk_rows, blk_lanes),
                         lambda p, s, S=s_dim: (0, p * S + s, 0)),
            pl.BlockSpec((blk_rows, blk_lanes),
                         lambda p, s, S=s_dim: (p * S + s, 0)),
        ],
        out_specs=pl.BlockSpec((1, 1), lambda p, s: (p, 0),
                               memory_space=pltpu.SMEM),
        scratch_shapes=[pltpu.SMEM((1, 1), jnp.float32)],
        compiler_params=pltpu.CompilerParams(
            dimension_semantics=("parallel", "arbitrary"),
            vmem_limit_bytes=32 << 20),
    )(z, t)

    total = jnp.sum(partials)
    if reduction == "mean":
        # matches loss.mean() over the N per-sample losses in the PyTorch module
        return total / n
    return total


def focal_loss_reference(logits, targets, alpha=0.25, gamma=2.0):
    # pure-JAX reference mirroring the PyTorch forward
    logp = jax.nn.log_softmax(logits.astype(jnp.float32), axis=-1)
    logp_t = jnp.take_along_axis(logp, targets[:, None].astype(jnp.int32), axis=-1)[:, 0]
    w = jnp.where(targets == 1, alpha, 1.0 - alpha).astype(jnp.float32)
    ce = -w * logp_t
    pt = jnp.exp(-ce)
    return jnp.sum((1.0 - pt) ** gamma * ce)


if __name__ == "__main__":
    key = jax.random.PRNGKey(0)
    k1, k2, k3, k4 = jax.random.split(key, 4)

    # small shape consistent with the module (binary classifier head)
    N, C = 8, 2
    logits = jax.random.normal(k1, (N, C), dtype=jnp.float32)
    targets = jax.random.randint(k2, (N,), 0, C, dtype=jnp.int32)

    out = focal_loss(logits, targets, alpha=0.25, gamma=2.0, reduction="sum")
    out = jax.block_until_ready(out)
    ref = focal_loss_reference(logits, targets, alpha=0.25, gamma=2.0)
    assert jnp.allclose(out, ref, atol=1e-5, rtol=1e-5), (out, ref)

    # larger case: multi-tile streaming + megacore partial sums + ragged padding
    N2 = 300000
    logits2 = jax.random.normal(k3, (N2, C), dtype=jnp.float32)
    targets2 = jax.random.randint(k4, (N2,), 0, C, dtype=jnp.int32)
    out2 = jax.block_until_ready(focal_loss(logits2, targets2, blk_rows=32))
    ref2 = focal_loss_reference(logits2, targets2)
    assert jnp.allclose(out2, ref2, rtol=1e-3), (out2, ref2)

    # bf16 logits stream at half the HBM bytes; compute stays f32 in-kernel
    logits2_bf16 = logits2.astype(jnp.bfloat16)
    out3 = jax.block_until_ready(focal_loss(logits2_bf16, targets2, blk_rows=32))
    ref3 = focal_loss_reference(logits2_bf16, targets2)
    assert jnp.allclose(out3, ref3, rtol=1e-3), (out3, ref3)

    # default (large-tile) path + mean reduction
    out4 = jax.block_until_ready(focal_loss(logits2, targets2, reduction="mean"))
    ref4 = ref2 / N2
    assert jnp.allclose(out4, ref4, rtol=1e-3), (out4, ref4)

    print("KERNEL_OK")
</pallas_src>

<mosaic_0001>
module attributes {stable_mosaic.version = 11 : i64} {
  func.func @focal_loss_kernel(%arg0: i32, %arg1: i32, %arg2: memref<2x32x2048xf32, #tpu.memory_space<vmem>>, %arg3: memref<32x2048xi8, #tpu.memory_space<vmem>>, %arg4: memref<1x1xf32, #tpu.memory_space<smem>>, %arg5: memref<1x1xf32, #tpu.memory_space<smem>>) attributes {dimension_semantics = [#tpu.dimension_semantics<parallel>, #tpu.dimension_semantics<arbitrary>], iteration_bounds = array<i64: 1, 1>, scalar_prefetch = 0 : i64, scratch_operands = 1 : i64, tpu.core_type = #tpu.core_type<tc>, window_params = [{transform_indices = @transform_0, window_bounds = array<i64: 2, 32, 2048>}, {transform_indices = @transform_1, window_bounds = array<i64: 32, 2048>}, {transform_indices = @transform_2, window_bounds = array<i64: 1, 1>}]} {
    %c0 = arith.constant 0 : index
    %c0_0 = arith.constant 0 : index
    %c0_1 = arith.constant 0 : index
    %0 = vector.load %arg2[%c0, %c0_0, %c0_1] : memref<2x32x2048xf32, #tpu.memory_space<vmem>>, vector<1x32x2048xf32>
    %1 = vector.shape_cast %0 : vector<1x32x2048xf32> to vector<32x2048xf32>
    %c1 = arith.constant 1 : index
    %c0_2 = arith.constant 0 : index
    %c0_3 = arith.constant 0 : index
    %2 = vector.load %arg2[%c1, %c0_2, %c0_3] : memref<2x32x2048xf32, #tpu.memory_space<vmem>>, vector<1x32x2048xf32>
    %3 = vector.shape_cast %2 : vector<1x32x2048xf32> to vector<32x2048xf32>
    %c0_4 = arith.constant 0 : index
    %c0_5 = arith.constant 0 : index
    %4 = vector.load %arg3[%c0_4, %c0_5] : memref<32x2048xi8, #tpu.memory_space<vmem>>, vector<32x2048xi8>
    %5 = arith.extsi %4 : vector<32x2048xi8> to vector<32x2048xi32>
    %c1_i32 = arith.constant 1 : i32
    %6 = vector.broadcast %c1_i32 : i32 to vector<32x2048xi32>
    %7 = arith.cmpi eq, %5, %6 : vector<32x2048xi32>
    %8 = arith.subf %1, %3 : vector<32x2048xf32>
    %cst = arith.constant 0.000000e+00 : f32
    %9 = vector.broadcast %cst : f32 to vector<32x2048xf32>
    %10 = arith.subf %9, %8 : vector<32x2048xf32>
    %11 = arith.select %7, %8, %10 : vector<32x2048xi1>, vector<32x2048xf32>
    %cst_6 = arith.constant 0.000000e+00 : f32
    %12 = vector.broadcast %cst_6 : f32 to vector<32x2048xf32>
    %13 = arith.maximumf %11, %12 : vector<32x2048xf32>
    %14 = math.absf %11 : vector<32x2048xf32>
    %cst_7 = arith.constant 0.000000e+00 : f32
    %15 = vector.broadcast %cst_7 : f32 to vector<32x2048xf32>
    %16 = arith.subf %15, %14 : vector<32x2048xf32>
    %17 = math.exp %16 : vector<32x2048xf32>
    %cst_8 = arith.constant 1.000000e+00 : f32
    %18 = vector.broadcast %cst_8 : f32 to vector<32x2048xf32>
    %19 = arith.addf %18, %17 : vector<32x2048xf32>
    %20 = math.log %19 : vector<32x2048xf32>
    %21 = arith.addf %13, %20 : vector<32x2048xf32>
    %cst_9 = arith.constant 2.500000e-01 : f32
    %cst_10 = arith.constant 7.500000e-01 : f32
    %22 = vector.broadcast %cst_9 : f32 to vector<32x2048xf32>
    %23 = vector.broadcast %cst_10 : f32 to vector<32x2048xf32>
    %24 = arith.select %7, %22, %23 : vector<32x2048xi1>, vector<32x2048xf32>
    %25 = arith.mulf %24, %21 : vector<32x2048xf32>
    %cst_11 = arith.constant 0.000000e+00 : f32
    %26 = vector.broadcast %cst_11 : f32 to vector<32x2048xf32>
    %27 = arith.subf %26, %25 : vector<32x2048xf32>
    %28 = math.exp %27 : vector<32x2048xf32>
    %cst_12 = arith.constant 1.000000e+00 : f32
    %29 = vector.broadcast %cst_12 : f32 to vector<32x2048xf32>
    %30 = arith.subf %29, %28 : vector<32x2048xf32>
    %31 = arith.mulf %30, %30 : vector<32x2048xf32>
    %32 = arith.mulf %31, %25 : vector<32x2048xf32>
    %c0_i32 = arith.constant 0 : i32
    %33 = arith.cmpi eq, %arg1, %c0_i32 : i32
    %34 = arith.extui %33 : i1 to i32
    %c0_i32_13 = arith.constant 0 : i32
    %35 = arith.cmpi ne, %34, %c0_i32_13 : i32
    scf.if %35 {
      %cst_21 = arith.constant 0.000000e+00 : f32
      %c0_22 = arith.constant 0 : index
      %c0_23 = arith.constant 0 : index
      %46 = memref.load %arg5[%c0_22, %c0_23] : memref<1x1xf32, #tpu.memory_space<smem>>
      memref.store %cst_21, %arg5[%c0_22, %c0_23] : memref<1x1xf32, #tpu.memory_space<smem>>
    } else {
    }
    %c0_14 = arith.constant 0 : index
    %c0_15 = arith.constant 0 : index
    %36 = memref.load %arg5[%c0_14, %c0_15] : memref<1x1xf32, #tpu.memory_space<smem>>
    %37 = vector.shape_cast %32 : vector<32x2048xf32> to vector<1x32x2048xf32>
    %cst_16 = arith.constant dense<0.000000e+00> : vector<1xf32>
    %38 = vector.multi_reduction <add>, %37, %cst_16 [1, 2] : vector<1x32x2048xf32> to vector<1xf32>
    %39 = vector.shape_cast %38 : vector<1xf32> to vector<1x1x1xf32>
    %40 = vector.extract %39[0, 0, 0] : f32 from vector<1x1x1xf32>
    %41 = arith.addf %36, %40 : f32
    %c0_17 = arith.constant 0 : index
    %c0_18 = arith.constant 0 : index
    %42 = memref.load %arg5[%c0_17, %c0_18] : memref<1x1xf32, #tpu.memory_space<smem>>
    memref.store %41, %arg5[%c0_17, %c0_18] : memref<1x1xf32, #tpu.memory_space<smem>>
    %c0_i32_19 = arith.constant 0 : i32
    %43 = arith.cmpi eq, %arg1, %c0_i32_19 : i32
    %44 = arith.extui %43 : i1 to i32
    %c0_i32_20 = arith.constant 0 : i32
    %45 = arith.cmpi ne, %44, %c0_i32_20 : i32
    scf.if %45 {
      %c0_21 = arith.constant 0 : index
      %c0_22 = arith.constant 0 : index
      %46 = memref.load %arg5[%c0_21, %c0_22] : memref<1x1xf32, #tpu.memory_space<smem>>
      %c0_23 = arith.constant 0 : index
      %c0_24 = arith.constant 0 : index
      %47 = memref.load %arg4[%c0_23, %c0_24] : memref<1x1xf32, #tpu.memory_space<smem>>
      memref.store %46, %arg4[%c0_23, %c0_24] : memref<1x1xf32, #tpu.memory_space<smem>>
    } else {
    }
    return
  }
  func.func @transform_0(%arg0: i32, %arg1: i32) -> (i32, i32, i32) {
    %c1_i32 = arith.constant 1 : i32
    %0 = arith.muli %arg0, %c1_i32 : i32
    %1 = arith.addi %0, %arg1 : i32
    %c0_i32 = arith.constant 0 : i32
    %c0_i32_0 = arith.constant 0 : i32
    %c0_i32_1 = arith.constant 0 : i32
    return %c0_i32, %1, %c0_i32_0 : i32, i32, i32
  }
  func.func @transform_1(%arg0: i32, %arg1: i32) -> (i32, i32) {
    %c1_i32 = arith.constant 1 : i32
    %0 = arith.muli %arg0, %c1_i32 : i32
    %1 = arith.addi %0, %arg1 : i32
    %c0_i32 = arith.constant 0 : i32
    %c0_i32_0 = arith.constant 0 : i32
    return %1, %c0_i32 : i32, i32
  }
  func.func @transform_2(%arg0: i32, %arg1: i32) -> (i32, i32) {
    %c0_i32 = arith.constant 0 : i32
    %c0_i32_0 = arith.constant 0 : i32
    return %arg0, %c0_i32 : i32, i32
  }
}

</mosaic_0001>

<llo_original>
// kernel: tpu_custom_call.1
$region0: #{tpu_custom_call.1}
  #allocation0 [shape = 'u32[]', space=smem, size = 0x4, offset = 0x4, fixed_abs, tag = 'smem constant byte address 0x4 - core index']
  #allocation1 [shape = 'u32[144,128]{1,0:T(1,128)}', space=vmem, size = 0x12000, scoped, tag = 'internal scratch']
  #allocation2 [shape = 'f32[1,1]{1,0:T(1,128)}', space=smem, size = 0x200, scoped, tag = 'scratch operand']
  %s0 = inlined_call_operand.hbm [shape: f32[2,32,2048], index: 0, kind: input, shape index: {}]
  %s1 = inlined_call_operand.hbm [shape: s8[32,2048], index: 1, kind: input, shape index: {}]
  %s2 = inlined_call_operand.hbm [shape: f32[1,1], index: 2, kind: output, shape index: {}]
  %s3 = sld [smem:[#allocation0]]
  $region34: #{tpu_custom_call.1} parent=0
    _
  %s5 = ssub.s32 1, %s3
  %s6 = scalar_select 0, %s5, %s3
  $region1: #{tpu_custom_call.1} parent=0
    #allocation3 [shape = 'u8[524288]{0}', space=vmem, size = 0x80000, scoped, tag = 'input window, operand 0, single buffered']
    #allocation4 [shape = 's32[1]{0}', space=sflag, size = 0x4, scoped, tag = 'scoped memory for tpu_custom_call.1']
    #allocation5 [shape = 's32[1]{0}', space=sflag, size = 0x4, scoped, tag = 'scoped memory for tpu_custom_call.1']
    #allocation6 [shape = 'u8[65536]{0}', space=vmem, size = 0x10000, scoped, tag = 'input window, operand 1, single buffered']
    #allocation7 [shape = 's32[1]{0}', space=sflag, size = 0x4, scoped, tag = 'scoped memory for tpu_custom_call.1']
    #allocation8 [shape = 'u8[512]{0}', space=smem, size = 0x200, scoped, tag = 'output window, operand 0, single buffered']
    %7 = vsyncpa [#allocation4], 0
    %8 = vsyncpa [#allocation7], 0
    %9 = vsyncpa [#allocation5], 0
    // Predicated region
    $region2: #{tpu_custom_call.1} parent=1 // pred_check
      _
    $region3: #{tpu_custom_call.1} parent=1 // pred_check_branch
      %11 = sbr.rel (0) target = $region5
    $region4: #{tpu_custom_call.1} parent=1 // pred_region
      %s12 = sadd.s32 0, 0
      %s13 = smul.u32 4, %s12
      %s15 = ssub.s32 16384, 16384
      %16 = vsyncadd [#allocation4], %s15
      %s17 = smul.addr %s13, 16
      %s18 = smul.addr %s17, 128
      %s19 = scalar_lea.hbm %s0, %s18
      %s20 = sshll.u32 [#allocation3], 4
      %s21 = int_to_ptr.vmem [resolvable:$true] %s20
      %26 = dma.hbm_to_vmem [thread:$0]  %s19, 16384, %s21, [#allocation4], 2048, 2048, 128
    $region5: #{tpu_custom_call.1} parent=1 // pred_fallthru
      _
    // Predicated region
    $region6: #{tpu_custom_call.1} parent=1 // pred_check
      _
    $region7: #{tpu_custom_call.1} parent=1 // pred_check_branch
      %28 = sbr.rel (0) target = $region9
    $region8: #{tpu_custom_call.1} parent=1 // pred_region
      %s29 = sadd.s32 0, 0
      %s31 = ssub.s32 2048, 2048
      %32 = vsyncadd [#allocation7], %s31
      %s33 = smul.addr %s29, 16
      %s34 = smul.addr %s33, 128
      %s35 = scalar_lea.hbm %s1, %s34
      %s37 = sshll.u32 [#allocation6], 4
      %s38 = int_to_ptr.vmem [resolvable:$true] %s37
      %40 = dma.hbm_to_vmem [thread:$0]  %s35, 2048, %s38, [#allocation7]
    $region9: #{tpu_custom_call.1} parent=1 // pred_fallthru
      _
    // Predicated region
    $region10: #{tpu_custom_call.1} parent=1 // pred_check
      _
    $region11: #{tpu_custom_call.1} parent=1 // pred_check_branch
      %42 = sbr.rel (0) target = $region13
    $region12: #{tpu_custom_call.1} parent=1 // pred_region
      %43 = dma.done [#allocation4], 16384
    $region13: #{tpu_custom_call.1} parent=1 // pred_fallthru
      _
    // Predicated region
    $region14: #{tpu_custom_call.1} parent=1 // pred_check
      _
    $region15: #{tpu_custom_call.1} parent=1 // pred_check_branch
      %45 = sbr.rel (0) target = $region17
    $region16: #{tpu_custom_call.1} parent=1 // pred_region
      %46 = dma.done [#allocation7], 2048
    $region17: #{tpu_custom_call.1} parent=1 // pred_fallthru
      _
    %s47 = sadd.s32 0, 0
    %s48 = smul.u32 4, %s47
    %s49 = sadd.s32 0, 0
    %v50 = vld [vmem:[#allocation3] sm:$0xff]
    %v51 = vld [vmem:[#allocation3 + $0x8] sm:$0xff]
    %v52 = vld [vmem:[#allocation3 + $0x10] sm:$0xff]
    %v53 = vld [vmem:[#allocation3 + $0x18] sm:$0xff]
    %v54 = vld [vmem:[#allocation3 + $0x20] sm:$0xff]
    %v55 = vld [vmem:[#allocation3 + $0x28] sm:$0xff]
    %v56 = vld [vmem:[#allocation3 + $0x30] sm:$0xff]
    %v57 = vld [vmem:[#allocation3 + $0x38] sm:$0xff]
    %v58 = vld [vmem:[#allocation3 + $0x40] sm:$0xff]
    %v59 = vld [vmem:[#allocation3 + $0x48] sm:$0xff]
    %v60 = vld [vmem:[#allocation3 + $0x50] sm:$0xff]
    %v61 = vld [vmem:[#allocation3 + $0x58] sm:$0xff]
    %v62 = vld [vmem:[#allocation3 + $0x60] sm:$0xff]
    %v63 = vld [vmem:[#allocation3 + $0x68] sm:$0xff]
    %v64 = vld [vmem:[#allocation3 + $0x70] sm:$0xff]
    %v65 = vld [vmem:[#allocation3 + $0x78] sm:$0xff]
    %v66 = vld [vmem:[#allocation3 + $0x80] sm:$0xff]
    %v67 = vld [vmem:[#allocation3 + $0x88] sm:$0xff]
    %v68 = vld [vmem:[#allocation3 + $0x90] sm:$0xff]
    %v69 = vld [vmem:[#allocation3 + $0x98] sm:$0xff]
    %v70 = vld [vmem:[#allocation3 + $0xa0] sm:$0xff]
    %v71 = vld [vmem:[#allocation3 + $0xa8] sm:$0xff]
    %v72 = vld [vmem:[#allocation3 + $0xb0] sm:$0xff]
    %v73 = vld [vmem:[#allocation3 + $0xb8] sm:$0xff]
    %v74 = vld [vmem:[#allocation3 + $0xc0] sm:$0xff]
    %v75 = vld [vmem:[#allocation3 + $0xc8] sm:$0xff]
    %v76 = vld [vmem:[#allocation3 + $0xd0] sm:$0xff]
    %v77 = vld [vmem:[#allocation3 + $0xd8] sm:$0xff]
    %v78 = vld [vmem:[#allocation3 + $0xe0] sm:$0xff]
    %v79 = vld [vmem:[#allocation3 + $0xe8] sm:$0xff]
    %v80 = vld [vmem:[#allocation3 + $0xf0] sm:$0xff]
    %v81 = vld [vmem:[#allocation3 + $0xf8] sm:$0xff]
    %v82 = vld [vmem:[#allocation3 + $0x100] sm:$0xff]
    %v83 = vld [vmem:[#allocation3 + $0x108] sm:$0xff]
    %v84 = vld [vmem:[#allocation3 + $0x110] sm:$0xff]
    %v85 = vld [vmem:[#allocation3 + $0x118] sm:$0xff]
    %v86 = vld [vmem:[#allocation3 + $0x120] sm:$0xff]
    %v87 = vld [vmem:[#allocation3 + $0x128] sm:$0xff]
    %v88 = vld [vmem:[#allocation3 + $0x130] sm:$0xff]
    %v89 = vld [vmem:[#allocation3 + $0x138] sm:$0xff]
    %v90 = vld [vmem:[#allocation3 + $0x140] sm:$0xff]
    %v91 = vld [vmem:[#allocation3 + $0x148] sm:$0xff]
    %v92 = vld [vmem:[#allocation3 + $0x150] sm:$0xff]
    %v93 = vld [vmem:[#allocation3 + $0x158] sm:$0xff]
    %v94 = vld [vmem:[#allocation3 + $0x160] sm:$0xff]
    %v95 = vld [vmem:[#allocation3 + $0x168] sm:$0xff]
    %v96 = vld [vmem:[#allocation3 + $0x170] sm:$0xff]
    %v97 = vld [vmem:[#allocation3 + $0x178] sm:$0xff]
    %v98 = vld [vmem:[#allocation3 + $0x180] sm:$0xff]
    %v99 = vld [vmem:[#allocation3 + $0x188] sm:$0xff]
    %v100 = vld [vmem:[#allocation3 + $0x190] sm:$0xff]
    %v101 = vld [vmem:[#allocation3 + $0x198] sm:$0xff]
    %v102 = vld [vmem:[#allocation3 + $0x1a0] sm:$0xff]
    %v103 = vld [vmem:[#allocation3 + $0x1a8] sm:$0xff]
    %v104 = vld [vmem:[#allocation3 + $0x1b0] sm:$0xff]
    %v105 = vld [vmem:[#allocation3 + $0x1b8] sm:$0xff]
    %v106 = vld [vmem:[#allocation3 + $0x1c0] sm:$0xff]
    %v107 = vld [vmem:[#allocation3 + $0x1c8] sm:$0xff]
    %v108 = vld [vmem:[#allocation3 + $0x1d0] sm:$0xff]
    %v109 = vld [vmem:[#allocation3 + $0x1d8] sm:$0xff]
    %v110 = vld [vmem:[#allocation3 + $0x1e0] sm:$0xff]
    %v111 = vld [vmem:[#allocation3 + $0x1e8] sm:$0xff]
    %v112 = vld [vmem:[#allocation3 + $0x1f0] sm:$0xff]
    %v113 = vld [vmem:[#allocation3 + $0x1f8] sm:$0xff]
    %s114 = scalar_lea.vmem [#allocation3], 512
    %v115 = vld [vmem:[%s114] sm:$0xff]
    %v116 = vld [vmem:[%s114 + $0x8] sm:$0xff]
    %v117 = vld [vmem:[%s114 + $0x10] sm:$0xff]
    %v118 = vld [vmem:[%s114 + $0x18] sm:$0xff]
    %v119 = vld [vmem:[%s114 + $0x20] sm:$0xff]
    %v120 = vld [vmem:[%s114 + $0x28] sm:$0xff]
    %v121 = vld [vmem:[%s114 + $0x30] sm:$0xff]
    %v122 = vld [vmem:[%s114 + $0x38] sm:$0xff]
    %v123 = vld [vmem:[%s114 + $0x40] sm:$0xff]
    %v124 = vld [vmem:[%s114 + $0x48] sm:$0xff]
    %v125 = vld [vmem:[%s114 + $0x50] sm:$0xff]
    %v126 = vld [vmem:[%s114 + $0x58] sm:$0xff]
    %v127 = vld [vmem:[%s114 + $0x60] sm:$0xff]
    %v128 = vld [vmem:[%s114 + $0x68] sm:$0xff]
    %v129 = vld [vmem:[%s114 + $0x70] sm:$0xff]
    %v130 = vld [vmem:[%s114 + $0x78] sm:$0xff]
    %v131 = vld [vmem:[%s114 + $0x80] sm:$0xff]
    %v132 = vld [vmem:[%s114 + $0x88] sm:$0xff]
    %v133 = vld [vmem:[%s114 + $0x90] sm:$0xff]
    %v134 = vld [vmem:[%s114 + $0x98] sm:$0xff]
    %v135 = vld [vmem:[%s114 + $0xa0] sm:$0xff]
    %v136 = vld [vmem:[%s114 + $0xa8] sm:$0xff]
    %v137 = vld [vmem:[%s114 + $0xb0] sm:$0xff]
    %v138 = vld [vmem:[%s114 + $0xb8] sm:$0xff]
    %v139 = vld [vmem:[%s114 + $0xc0] sm:$0xff]
    %v140 = vld [vmem:[%s114 + $0xc8] sm:$0xff]
    %v141 = vld [vmem:[%s114 + $0xd0] sm:$0xff]
    %v142 = vld [vmem:[%s114 + $0xd8] sm:$0xff]
    %v143 = vld [vmem:[%s114 + $0xe0] sm:$0xff]
    %v144 = vld [vmem:[%s114 + $0xe8] sm:$0xff]
    %v145 = vld [vmem:[%s114 + $0xf0] sm:$0xff]
    %v146 = vld [vmem:[%s114 + $0xf8] sm:$0xff]
    %v147 = vld [vmem:[%s114 + $0x100] sm:$0xff]
    %v148 = vld [vmem:[%s114 + $0x108] sm:$0xff]
    %v149 = vld [vmem:[%s114 + $0x110] sm:$0xff]
    %v150 = vld [vmem:[%s114 + $0x118] sm:$0xff]
    %v151 = vld [vmem:[%s114 + $0x120] sm:$0xff]
    %v152 = vld [vmem:[%s114 + $0x128] sm:$0xff]
    %v153 = vld [vmem:[%s114 + $0x130] sm:$0xff]
    %v154 = vld [vmem:[%s114 + $0x138] sm:$0xff]
    %v155 = vld [vmem:[%s114 + $0x140] sm:$0xff]
    %v156 = vld [vmem:[%s114 + $0x148] sm:$0xff]
    %v157 = vld [vmem:[%s114 + $0x150] sm:$0xff]
    %v158 = vld [vmem:[%s114 + $0x158] sm:$0xff]
    %v159 = vld [vmem:[%s114 + $0x160] sm:$0xff]
    %v160 = vld [vmem:[%s114 + $0x168] sm:$0xff]
    %v161 = vld [vmem:[%s114 + $0x170] sm:$0xff]
    %v162 = vld [vmem:[%s114 + $0x178] sm:$0xff]
    %v163 = vld [vmem:[%s114 + $0x180] sm:$0xff]
    %v164 = vld [vmem:[%s114 + $0x188] sm:$0xff]
    %v165 = vld [vmem:[%s114 + $0x190] sm:$0xff]
    %v166 = vld [vmem:[%s114 + $0x198] sm:$0xff]
    %v167 = vld [vmem:[%s114 + $0x1a0] sm:$0xff]
    %v168 = vld [vmem:[%s114 + $0x1a8] sm:$0xff]
    %v169 = vld [vmem:[%s114 + $0x1b0] sm:$0xff]
    %v170 = vld [vmem:[%s114 + $0x1b8] sm:$0xff]
    %v171 = vld [vmem:[%s114 + $0x1c0] sm:$0xff]
    %v172 = vld [vmem:[%s114 + $0x1c8] sm:$0xff]
    %v173 = vld [vmem:[%s114 + $0x1d0] sm:$0xff]
    %v174 = vld [vmem:[%s114 + $0x1d8] sm:$0xff]
    %v175 = vld [vmem:[%s114 + $0x1e0] sm:$0xff]
    %v176 = vld [vmem:[%s114 + $0x1e8] sm:$0xff]
    %v177 = vld [vmem:[%s114 + $0x1f0] sm:$0xff]
    %v178 = vld [vmem:[%s114 + $0x1f8] sm:$0xff]
    %v179 = vld [vmem:[#allocation6] sm:$0xff]
    %v180 = vld [vmem:[#allocation6 + $0x8] sm:$0xff]
    %v181 = vld [vmem:[#allocation6 + $0x10] sm:$0xff]
    %v182 = vld [vmem:[#allocation6 + $0x18] sm:$0xff]
    %v183 = vld [vmem:[#allocation6 + $0x20] sm:$0xff]
    %v184 = vld [vmem:[#allocation6 + $0x28] sm:$0xff]
    %v185 = vld [vmem:[#allocation6 + $0x30] sm:$0xff]
    %v186 = vld [vmem:[#allocation6 + $0x38] sm:$0xff]
    %v187 = vld [vmem:[#allocation6 + $0x40] sm:$0xff]
    %v188 = vld [vmem:[#allocation6 + $0x48] sm:$0xff]
    %v189 = vld [vmem:[#allocation6 + $0x50] sm:$0xff]
    %v190 = vld [vmem:[#allocation6 + $0x58] sm:$0xff]
    %v191 = vld [vmem:[#allocation6 + $0x60] sm:$0xff]
    %v192 = vld [vmem:[#allocation6 + $0x68] sm:$0xff]
    %v193 = vld [vmem:[#allocation6 + $0x70] sm:$0xff]
    %v194 = vld [vmem:[#allocation6 + $0x78] sm:$0xff]
    %v195 = vunpack.c.0.s8 %v179
    %v196 = vunpack.c.0.s8 %v180
    %v197 = vunpack.c.0.s8 %v181
    %v198 = vunpack.c.0.s8 %v182
    %v199 = vunpack.c.0.s8 %v183
    %v200 = vunpack.c.0.s8 %v184
    %v201 = vunpack.c.0.s8 %v185
    %v202 = vunpack.c.0.s8 %v186
    %v203 = vunpack.c.0.s8 %v187
    %v204 = vunpack.c.0.s8 %v188
    %v205 = vunpack.c.0.s8 %v189
    %v206 = vunpack.c.0.s8 %v190
    %v207 = vunpack.c.0.s8 %v191
    %v208 = vunpack.c.0.s8 %v192
    %v209 = vunpack.c.0.s8 %v193
    %v210 = vunpack.c.0.s8 %v194
    %v211 = vunpack.c.1.s8 %v179
    %v212 = vunpack.c.1.s8 %v180
    %v213 = vunpack.c.1.s8 %v181
    %v214 = vunpack.c.1.s8 %v182
    %v215 = vunpack.c.1.s8 %v183
    %v216 = vunpack.c.1.s8 %v184
    %v217 = vunpack.c.1.s8 %v185
    %v218 = vunpack.c.1.s8 %v186
    %v219 = vunpack.c.1.s8 %v187
    %v220 = vunpack.c.1.s8 %v188
    %v221 = vunpack.c.1.s8 %v189
    %v222 = vunpack.c.1.s8 %v190
    %v223 = vunpack.c.1.s8 %v191
    %v224 = vunpack.c.1.s8 %v192
    %v225 = vunpack.c.1.s8 %v193
    %v226 = vunpack.c.1.s8 %v194
    %v227 = vunpack.c.2.s8 %v179
    %v228 = vunpack.c.2.s8 %v180
    %v229 = vunpack.c.2.s8 %v181
    %v230 = vunpack.c.2.s8 %v182
    %v231 = vunpack.c.2.s8 %v183
    %v232 = vunpack.c.2.s8 %v184
    %v233 = vunpack.c.2.s8 %v185
    %v234 = vunpack.c.2.s8 %v186
    %v235 = vunpack.c.2.s8 %v187
    %v236 = vunpack.c.2.s8 %v188
    %v237 = vunpack.c.2.s8 %v189
    %v238 = vunpack.c.2.s8 %v190
    %v239 = vunpack.c.2.s8 %v191
    %v240 = vunpack.c.2.s8 %v192
    %v241 = vunpack.c.2.s8 %v193
    %v242 = vunpack.c.2.s8 %v194
    %v243 = vunpack.c.3.s8 %v179
    %v244 = vunpack.c.3.s8 %v180
    %v245 = vunpack.c.3.s8 %v181
    %v246 = vunpack.c.3.s8 %v182
    %v247 = vunpack.c.3.s8 %v183
    %v248 = vunpack.c.3.s8 %v184
    %v249 = vunpack.c.3.s8 %v185
    %v250 = vunpack.c.3.s8 %v186
    %v251 = vunpack.c.3.s8 %v187
    %v252 = vunpack.c.3.s8 %v188
    %v253 = vunpack.c.3.s8 %v189
    %v254 = vunpack.c.3.s8 %v190
    %v255 = vunpack.c.3.s8 %v191
    %v256 = vunpack.c.3.s8 %v192
    %v257 = vunpack.c.3.s8 %v193
    %v258 = vunpack.c.3.s8 %v194
    %vm259 = vcmp.eq.s32.totalorder %v195, 1
    %vm260 = vcmp.eq.s32.totalorder %v196, 1
    %vm261 = vcmp.eq.s32.totalorder %v197, 1
    %vm262 = vcmp.eq.s32.totalorder %v198, 1
    %vm263 = vcmp.eq.s32.totalorder %v199, 1
    %vm264 = vcmp.eq.s32.totalorder %v200, 1
    %vm265 = vcmp.eq.s32.totalorder %v201, 1
    %vm266 = vcmp.eq.s32.totalorder %v202, 1
    %vm267 = vcmp.eq.s32.totalorder %v203, 1
    %vm268 = vcmp.eq.s32.totalorder %v204, 1
    %vm269 = vcmp.eq.s32.totalorder %v205, 1
    %vm270 = vcmp.eq.s32.totalorder %v206, 1
    %vm271 = vcmp.eq.s32.totalorder %v207, 1
    %vm272 = vcmp.eq.s32.totalorder %v208, 1
    %vm273 = vcmp.eq.s32.totalorder %v209, 1
    %vm274 = vcmp.eq.s32.totalorder %v210, 1
    %vm275 = vcmp.eq.s32.totalorder %v211, 1
    %vm276 = vcmp.eq.s32.totalorder %v212, 1
    %vm277 = vcmp.eq.s32.totalorder %v213, 1
    %vm278 = vcmp.eq.s32.totalorder %v214, 1
    %vm279 = vcmp.eq.s32.totalorder %v215, 1
    %vm280 = vcmp.eq.s32.totalorder %v216, 1
    %vm281 = vcmp.eq.s32.totalorder %v217, 1
    %vm282 = vcmp.eq.s32.totalorder %v218, 1
    %vm283 = vcmp.eq.s32.totalorder %v219, 1
    %vm284 = vcmp.eq.s32.totalorder %v220, 1
    %vm285 = vcmp.eq.s32.totalorder %v221, 1
    %vm286 = vcmp.eq.s32.totalorder %v222, 1
    %vm287 = vcmp.eq.s32.totalorder %v223, 1
    %vm288 = vcmp.eq.s32.totalorder %v224, 1
    %vm289 = vcmp.eq.s32.totalorder %v225, 1
    %vm290 = vcmp.eq.s32.totalorder %v226, 1
    %vm291 = vcmp.eq.s32.totalorder %v227, 1
    %vm292 = vcmp.eq.s32.totalorder %v228, 1
    %vm293 = vcmp.eq.s32.totalorder %v229, 1
    %vm294 = vcmp.eq.s32.totalorder %v230, 1
    %vm295 = vcmp.eq.s32.totalorder %v231, 1
    %vm296 = vcmp.eq.s32.totalorder %v232, 1
    %vm297 = vcmp.eq.s32.totalorder %v233, 1
    %vm298 = vcmp.eq.s32.totalorder %v234, 1
    %vm299 = vcmp.eq.s32.totalorder %v235, 1
    %vm300 = vcmp.eq.s32.totalorder %v236, 1
    %vm301 = vcmp.eq.s32.totalorder %v237, 1
    %vm302 = vcmp.eq.s32.totalorder %v238, 1
    %vm303 = vcmp.eq.s32.totalorder %v239, 1
    %vm304 = vcmp.eq.s32.totalorder %v240, 1
    %vm305 = vcmp.eq.s32.totalorder %v241, 1
    %vm306 = vcmp.eq.s32.totalorder %v242, 1
    %vm307 = vcmp.eq.s32.totalorder %v243, 1
    %vm308 = vcmp.eq.s32.totalorder %v244, 1
    %vm309 = vcmp.eq.s32.totalorder %v245, 1
    %vm310 = vcmp.eq.s32.totalorder %v246, 1
    %vm311 = vcmp.eq.s32.totalorder %v247, 1
    %vm312 = vcmp.eq.s32.totalorder %v248, 1
    %vm313 = vcmp.eq.s32.totalorder %v249, 1
    %vm314 = vcmp.eq.s32.totalorder %v250, 1
    %vm315 = vcmp.eq.s32.totalorder %v251, 1
    %vm316 = vcmp.eq.s32.totalorder %v252, 1
    %vm317 = vcmp.eq.s32.totalorder %v253, 1
    %vm318 = vcmp.eq.s32.totalorder %v254, 1
    %vm319 = vcmp.eq.s32.totalorder %v255, 1
    %vm320 = vcmp.eq.s32.totalorder %v256, 1
    %vm321 = vcmp.eq.s32.totalorder %v257, 1
    %vm322 = vcmp.eq.s32.totalorder %v258, 1
    %v323 = vsub.f32 %v50, %v115
    %v324 = vsub.f32 %v51, %v116
    %v325 = vsub.f32 %v52, %v117
    %v326 = vsub.f32 %v53, %v118
    %v327 = vsub.f32 %v54, %v119
    %v328 = vsub.f32 %v55, %v120
    %v329 = vsub.f32 %v56, %v121
    %v330 = vsub.f32 %v57, %v122
    %v331 = vsub.f32 %v58, %v123
    %v332 = vsub.f32 %v59, %v124
    %v333 = vsub.f32 %v60, %v125
    %v334 = vsub.f32 %v61, %v126
    %v335 = vsub.f32 %v62, %v127
    %v336 = vsub.f32 %v63, %v128
    %v337 = vsub.f32 %v64, %v129
    %v338 = vsub.f32 %v65, %v130
    %v339 = vsub.f32 %v66, %v131
    %v340 = vsub.f32 %v67, %v132
    %v341 = vsub.f32 %v68, %v133
    %v342 = vsub.f32 %v69, %v134
    %v343 = vsub.f32 %v70, %v135
    %v344 = vsub.f32 %v71, %v136
    %v345 = vsub.f32 %v72, %v137
    %v346 = vsub.f32 %v73, %v138
    %v347 = vsub.f32 %v74, %v139
    %v348 = vsub.f32 %v75, %v140
    %v349 = vsub.f32 %v76, %v141
    %v350 = vsub.f32 %v77, %v142
    %v351 = vsub.f32 %v78, %v143
    %v352 = vsub.f32 %v79, %v144
    %v353 = vsub.f32 %v80, %v145
    %v354 = vsub.f32 %v81, %v146
    %v355 = vsub.f32 %v82, %v147
    %v356 = vsub.f32 %v83, %v148
    %v357 = vsub.f32 %v84, %v149
    %v358 = vsub.f32 %v85, %v150
    %v359 = vsub.f32 %v86, %v151
    %v360 = vsub.f32 %v87, %v152
    %v361 = vsub.f32 %v88, %v153
    %v362 = vsub.f32 %v89, %v154
    %v363 = vsub.f32 %v90, %v155
    %v364 = vsub.f32 %v91, %v156
    %v365 = vsub.f32 %v92, %v157
    %v366 = vsub.f32 %v93, %v158
    %v367 = vsub.f32 %v94, %v159
    %v368 = vsub.f32 %v95, %v160
    %v369 = vsub.f32 %v96, %v161
    %v370 = vsub.f32 %v97, %v162
    %v371 = vsub.f32 %v98, %v163
    %v372 = vsub.f32 %v99, %v164
    %v373 = vsub.f32 %v100, %v165
    %v374 = vsub.f32 %v101, %v166
    %v375 = vsub.f32 %v102, %v167
    %v376 = vsub.f32 %v103, %v168
    %v377 = vsub.f32 %v104, %v169
    %v378 = vsub.f32 %v105, %v170
    %v379 = vsub.f32 %v106, %v171
    %v380 = vsub.f32 %v107, %v172
    %v381 = vsub.f32 %v108, %v173
    %v382 = vsub.f32 %v109, %v174
    %v383 = vsub.f32 %v110, %v175
    %v384 = vsub.f32 %v111, %v176
    %v385 = vsub.f32 %v112, %v177
    %v386 = vsub.f32 %v113, %v178
    %v387 = vsub.f32 0.0, %v323
    %v388 = vsub.f32 0.0, %v324
    %v389 = vsub.f32 0.0, %v325
    %v390 = vsub.f32 0.0, %v326
    %v391 = vsub.f32 0.0, %v327
    %v392 = vsub.f32 0.0, %v328
    %v393 = vsub.f32 0.0, %v329
    %v394 = vsub.f32 0.0, %v330
    %v395 = vsub.f32 0.0, %v331
    %v396 = vsub.f32 0.0, %v332
    %v397 = vsub.f32 0.0, %v333
    %v398 = vsub.f32 0.0, %v334
    %v399 = vsub.f32 0.0, %v335
    %v400 = vsub.f32 0.0, %v336
    %v401 = vsub.f32 0.0, %v337
    %v402 = vsub.f32 0.0, %v338
    %v403 = vsub.f32 0.0, %v339
    %v404 = vsub.f32 0.0, %v340
    %v405 = vsub.f32 0.0, %v341
    %v406 = vsub.f32 0.0, %v342
    %v407 = vsub.f32 0.0, %v343
    %v408 = vsub.f32 0.0, %v344
    %v409 = vsub.f32 0.0, %v345
    %v410 = vsub.f32 0.0, %v346
    %v411 = vsub.f32 0.0, %v347
    %v412 = vsub.f32 0.0, %v348
    %v413 = vsub.f32 0.0, %v349
    %v414 = vsub.f32 0.0, %v350
    %v415 = vsub.f32 0.0, %v351
    %v416 = vsub.f32 0.0, %v352
    %v417 = vsub.f32 0.0, %v353
    %v418 = vsub.f32 0.0, %v354
    %v419 = vsub.f32 0.0, %v355
    %v420 = vsub.f32 0.0, %v356
    %v421 = vsub.f32 0.0, %v357
    %v422 = vsub.f32 0.0, %v358
    %v423 = vsub.f32 0.0, %v359
    %v424 = vsub.f32 0.0, %v360
    %v425 = vsub.f32 0.0, %v361
    %v426 = vsub.f32 0.0, %v362
    %v427 = vsub.f32 0.0, %v363
    %v428 = vsub.f32 0.0, %v364
    %v429 = vsub.f32 0.0, %v365
    %v430 = vsub.f32 0.0, %v366
    %v431 = vsub.f32 0.0, %v367
    %v432 = vsub.f32 0.0, %v368
    %v433 = vsub.f32 0.0, %v369
    %v434 = vsub.f32 0.0, %v370
    %v435 = vsub.f32 0.0, %v371
    %v436 = vsub.f32 0.0, %v372
    %v437 = vsub.f32 0.0, %v373
    %v438 = vsub.f32 0.0, %v374
    %v439 = vsub.f32 0.0, %v375
    %v440 = vsub.f32 0.0, %v376
    %v441 = vsub.f32 0.0, %v377
    %v442 = vsub.f32 0.0, %v378
    %v443 = vsub.f32 0.0, %v379
    %v444 = vsub.f32 0.0, %v380
    %v445 = vsub.f32 0.0, %v381
    %v446 = vsub.f32 0.0, %v382
    %v447 = vsub.f32 0.0, %v383
    %v448 = vsub.f32 0.0, %v384
    %v449 = vsub.f32 0.0, %v385
    %v450 = vsub.f32 0.0, %v386
    %v451 = vsel %vm259, %v323, %v387
    %v452 = vsel %vm260, %v324, %v388
    %v453 = vsel %vm261, %v325, %v389
    %v454 = vsel %vm262, %v326, %v390
    %v455 = vsel %vm263, %v327, %v391
    %v456 = vsel %vm264, %v328, %v392
    %v457 = vsel %vm265, %v329, %v393
    %v458 = vsel %vm266, %v330, %v394
    %v459 = vsel %vm267, %v331, %v395
    %v460 = vsel %vm268, %v332, %v396
    %v461 = vsel %vm269, %v333, %v397
    %v462 = vsel %vm270, %v334, %v398
    %v463 = vsel %vm271, %v335, %v399
    %v464 = vsel %vm272, %v336, %v400
    %v465 = vsel %vm273, %v337, %v401
    %v466 = vsel %vm274, %v338, %v402
    %v467 = vsel %vm275, %v339, %v403
    %v468 = vsel %vm276, %v340, %v404
    %v469 = vsel %vm277, %v341, %v405
    %v470 = vsel %vm278, %v342, %v406
    %v471 = vsel %vm279, %v343, %v407
    %v472 = vsel %vm280, %v344, %v408
    %v473 = vsel %vm281, %v345, %v409
    %v474 = vsel %vm282, %v346, %v410
    %v475 = vsel %vm283, %v347, %v411
    %v476 = vsel %vm284, %v348, %v412
    %v477 = vsel %vm285, %v349, %v413
    %v478 = vsel %vm286, %v350, %v414
    %v479 = vsel %vm287, %v351, %v415
    %v480 = vsel %vm288, %v352, %v416
    %v481 = vsel %vm289, %v353, %v417
    %v482 = vsel %vm290, %v354, %v418
    %v483 = vsel %vm291, %v355, %v419
    %v484 = vsel %vm292, %v356, %v420
    %v485 = vsel %vm293, %v357, %v421
    %v486 = vsel %vm294, %v358, %v422
    %v487 = vsel %vm295, %v359, %v423
    %v488 = vsel %vm296, %v360, %v424
    %v489 = vsel %vm297, %v361, %v425
    %v490 = vsel %vm298, %v362, %v426
    %v491 = vsel %vm299, %v363, %v427
    %v492 = vsel %vm300, %v364, %v428
    %v493 = vsel %vm301, %v365, %v429
    %v494 = vsel %vm302, %v366, %v430
    %v495 = vsel %vm303, %v367, %v431
    %v496 = vsel %vm304, %v368, %v432
    %v497 = vsel %vm305, %v369, %v433
    %v498 = vsel %vm306, %v370, %v434
    %v499 = vsel %vm307, %v371, %v435
    %v500 = vsel %vm308, %v372, %v436
    %v501 = vsel %vm309, %v373, %v437
    %v502 = vsel %vm310, %v374, %v438
    %v503 = vsel %vm311, %v375, %v439
    %v504 = vsel %vm312, %v376, %v440
    %v505 = vsel %vm313, %v377, %v441
    %v506 = vsel %vm314, %v378, %v442
    %v507 = vsel %vm315, %v379, %v443
    %v508 = vsel %vm316, %v380, %v444
    %v509 = vsel %vm317, %v381, %v445
    %v510 = vsel %vm318, %v382, %v446
    %v511 = vsel %vm319, %v383, %v447
    %v512 = vsel %vm320, %v384, %v448
    %v513 = vsel %vm321, %v385, %v449
    %v514 = vsel %vm322, %v386, %v450
    %v515 = vmax.f32 %v451, 0.0
    %v516 = vmax.f32 %v452, 0.0
    %v517 = vmax.f32 %v453, 0.0
    %v518 = vmax.f32 %v454, 0.0
    %v519 = vmax.f32 %v455, 0.0
    %v520 = vmax.f32 %v456, 0.0
    %v521 = vmax.f32 %v457, 0.0
    %v522 = vmax.f32 %v458, 0.0
    %v523 = vmax.f32 %v459, 0.0
    %v524 = vmax.f32 %v460, 0.0
    %v525 = vmax.f32 %v461, 0.0
    %v526 = vmax.f32 %v462, 0.0
    %v527 = vmax.f32 %v463, 0.0
    %v528 = vmax.f32 %v464, 0.0
    %v529 = vmax.f32 %v465, 0.0
    %v530 = vmax.f32 %v466, 0.0
    %v531 = vmax.f32 %v467, 0.0
    %v532 = vmax.f32 %v468, 0.0
    %v533 = vmax.f32 %v469, 0.0
    %v534 = vmax.f32 %v470, 0.0
    %v535 = vmax.f32 %v471, 0.0
    %v536 = vmax.f32 %v472, 0.0
    %v537 = vmax.f32 %v473, 0.0
    %v538 = vmax.f32 %v474, 0.0
    %v539 = vmax.f32 %v475, 0.0
    %v540 = vmax.f32 %v476, 0.0
    %v541 = vmax.f32 %v477, 0.0
    %v542 = vmax.f32 %v478, 0.0
    %v543 = vmax.f32 %v479, 0.0
    %v544 = vmax.f32 %v480, 0.0
    %v545 = vmax.f32 %v481, 0.0
    %v546 = vmax.f32 %v482, 0.0
    %v547 = vmax.f32 %v483, 0.0
    %v548 = vmax.f32 %v484, 0.0
    %v549 = vmax.f32 %v485, 0.0
    %v550 = vmax.f32 %v486, 0.0
    %v551 = vmax.f32 %v487, 0.0
    %v552 = vmax.f32 %v488, 0.0
    %v553 = vmax.f32 %v489, 0.0
    %v554 = vmax.f32 %v490, 0.0
    %v555 = vmax.f32 %v491, 0.0
    %v556 = vmax.f32 %v492, 0.0
    %v557 = vmax.f32 %v493, 0.0
    %v558 = vmax.f32 %v494, 0.0
    %v559 = vmax.f32 %v495, 0.0
    %v560 = vmax.f32 %v496, 0.0
    %v561 = vmax.f32 %v497, 0.0
    %v562 = vmax.f32 %v498, 0.0
    %v563 = vmax.f32 %v499, 0.0
    %v564 = vmax.f32 %v500, 0.0
    %v565 = vmax.f32 %v501, 0.0
    %v566 = vmax.f32 %v502, 0.0
    %v567 = vmax.f32 %v503, 0.0
    %v568 = vmax.f32 %v504, 0.0
    %v569 = vmax.f32 %v505, 0.0
    %v570 = vmax.f32 %v506, 0.0
    %v571 = vmax.f32 %v507, 0.0
    %v572 = vmax.f32 %v508, 0.0
    %v573 = vmax.f32 %v509, 0.0
    %v574 = vmax.f32 %v510, 0.0
    %v575 = vmax.f32 %v511, 0.0
    %v576 = vmax.f32 %v512, 0.0
    %v577 = vmax.f32 %v513, 0.0
    %v578 = vmax.f32 %v514, 0.0
    %v579 = vand.u32 2147483647, %v451
    %v580 = vand.u32 2147483647, %v452
    %v581 = vand.u32 2147483647, %v453
    %v582 = vand.u32 2147483647, %v454
    %v583 = vand.u32 2147483647, %v455
    %v584 = vand.u32 2147483647, %v456
    %v585 = vand.u32 2147483647, %v457
    %v586 = vand.u32 2147483647, %v458
    %v587 = vand.u32 2147483647, %v459
    %v588 = vand.u32 2147483647, %v460
    %v589 = vand.u32 2147483647, %v461
    %v590 = vand.u32 2147483647, %v462
    %v591 = vand.u32 2147483647, %v463
    %v592 = vand.u32 2147483647, %v464
    %v593 = vand.u32 2147483647, %v465
    %v594 = vand.u32 2147483647, %v466
    %v595 = vand.u32 2147483647, %v467
    %v596 = vand.u32 2147483647, %v468
    %v597 = vand.u32 2147483647, %v469
    %v598 = vand.u32 2147483647, %v470
    %v599 = vand.u32 2147483647, %v471
    %v600 = vand.u32 2147483647, %v472
    %v601 = vand.u32 2147483647, %v473
    %v602 = vand.u32 2147483647, %v474
    %v603 = vand.u32 2147483647, %v475
    %v604 = vand.u32 2147483647, %v476
    %v605 = vand.u32 2147483647, %v477
    %v606 = vand.u32 2147483647, %v478
    %v607 = vand.u32 2147483647, %v479
    %v608 = vand.u32 2147483647, %v480
    %v609 = vand.u32 2147483647, %v481
    %v610 = vand.u32 2147483647, %v482
    %v611 = vand.u32 2147483647, %v483
    %v612 = vand.u32 2147483647, %v484
    %v613 = vand.u32 2147483647, %v485
    %v614 = vand.u32 2147483647, %v486
    %v615 = vand.u32 2147483647, %v487
    %v616 = vand.u32 2147483647, %v488
    %v617 = vand.u32 2147483647, %v489
    %v618 = vand.u32 2147483647, %v490
    %v619 = vand.u32 2147483647, %v491
    %v620 = vand.u32 2147483647, %v492
    %v621 = vand.u32 2147483647, %v493
    %v622 = vand.u32 2147483647, %v494
    %v623 = vand.u32 2147483647, %v495
    %v624 = vand.u32 2147483647, %v496
    %v625 = vand.u32 2147483647, %v497
    %v626 = vand.u32 2147483647, %v498
    %v627 = vand.u32 2147483647, %v499
    %v628 = vand.u32 2147483647, %v500
    %v629 = vand.u32 2147483647, %v501
    %v630 = vand.u32 2147483647, %v502
    %v631 = vand.u32 2147483647, %v503
    %v632 = vand.u32 2147483647, %v504
    %v633 = vand.u32 2147483647, %v505
    %v634 = vand.u32 2147483647, %v506
    %v635 = vand.u32 2147483647, %v507
    %v636 = vand.u32 2147483647, %v508
    %v637 = vand.u32 2147483647, %v509
    %v638 = vand.u32 2147483647, %v510
    %v639 = vand.u32 2147483647, %v511
    %v640 = vand.u32 2147483647, %v512
    %v641 = vand.u32 2147483647, %v513
    %v642 = vand.u32 2147483647, %v514
    %v643 = vsub.f32 0.0, %v579
    %v644 = vsub.f32 0.0, %v580
    %v645 = vsub.f32 0.0, %v581
    %v646 = vsub.f32 0.0, %v582
    %v647 = vsub.f32 0.0, %v583
    %v648 = vsub.f32 0.0, %v584
    %v649 = vsub.f32 0.0, %v585
    %v650 = vsub.f32 0.0, %v586
    %v651 = vsub.f32 0.0, %v587
    %v652 = vsub.f32 0.0, %v588
    %v653 = vsub.f32 0.0, %v589
    %v654 = vsub.f32 0.0, %v590
    %v655 = vsub.f32 0.0, %v591
    %v656 = vsub.f32 0.0, %v592
    %v657 = vsub.f32 0.0, %v593
    %v658 = vsub.f32 0.0, %v594
    %v659 = vsub.f32 0.0, %v595
    %v660 = vsub.f32 0.0, %v596
    %v661 = vsub.f32 0.0, %v597
    %v662 = vsub.f32 0.0, %v598
    %v663 = vsub.f32 0.0, %v599
    %v664 = vsub.f32 0.0, %v600
    %v665 = vsub.f32 0.0, %v601
    %v666 = vsub.f32 0.0, %v602
    %v667 = vsub.f32 0.0, %v603
    %v668 = vsub.f32 0.0, %v604
    %v669 = vsub.f32 0.0, %v605
    %v670 = vsub.f32 0.0, %v606
    %v671 = vsub.f32 0.0, %v607
    %v672 = vsub.f32 0.0, %v608
    %v673 = vsub.f32 0.0, %v609
    %v674 = vsub.f32 0.0, %v610
    %v675 = vsub.f32 0.0, %v611
    %v676 = vsub.f32 0.0, %v612
    %v677 = vsub.f32 0.0, %v613
    %v678 = vsub.f32 0.0, %v614
    %v679 = vsub.f32 0.0, %v615
    %v680 = vsub.f32 0.0, %v616
    %v681 = vsub.f32 0.0, %v617
    %v682 = vsub.f32 0.0, %v618
    %v683 = vsub.f32 0.0, %v619
    %v684 = vsub.f32 0.0, %v620
    %v685 = vsub.f32 0.0, %v621
    %v686 = vsub.f32 0.0, %v622
    %v687 = vsub.f32 0.0, %v623
    %v688 = vsub.f32 0.0, %v624
    %v689 = vsub.f32 0.0, %v625
    %v690 = vsub.f32 0.0, %v626
    %v691 = vsub.f32 0.0, %v627
    %v692 = vsub.f32 0.0, %v628
    %v693 = vsub.f32 0.0, %v629
    %v694 = vsub.f32 0.0, %v630
    %v695 = vsub.f32 0.0, %v631
    %v696 = vsub.f32 0.0, %v632
    %v697 = vsub.f32 0.0, %v633
    %v698 = vsub.f32 0.0, %v634
    %v699 = vsub.f32 0.0, %v635
    %v700 = vsub.f32 0.0, %v636
    %v701 = vsub.f32 0.0, %v637
    %v702 = vsub.f32 0.0, %v638
    %v703 = vsub.f32 0.0, %v639
    %v704 = vsub.f32 0.0, %v640
    %v705 = vsub.f32 0.0, %v641
    %v706 = vsub.f32 0.0, %v642
    %v707 = vmul.f32 %v643, 1.442695
    %v708 = vpow.pop %v707
    %v709 = vmul.f32 %v644, 1.442695
    %v710 = vpow.pop %v709
    %v711 = vmul.f32 %v645, 1.442695
    %v712 = vpow.pop %v711
    %v713 = vmul.f32 %v646, 1.442695
    %v714 = vpow.pop %v713
    %v715 = vmul.f32 %v647, 1.442695
    %v716 = vpow.pop %v715
    %v717 = vmul.f32 %v648, 1.442695
    %v718 = vpow.pop %v717
    %v719 = vmul.f32 %v649, 1.442695
    %v720 = vpow.pop %v719
    %v721 = vmul.f32 %v650, 1.442695
    %v722 = vpow.pop %v721
    %v723 = vmul.f32 %v651, 1.442695
    %v724 = vpow.pop %v723
    %v725 = vmul.f32 %v652, 1.442695
    %v726 = vpow.pop %v725
    %v727 = vmul.f32 %v653, 1.442695
    %v728 = vpow.pop %v727
    %v729 = vmul.f32 %v654, 1.442695
    %v730 = vpow.pop %v729
    %v731 = vmul.f32 %v655, 1.442695
    %v732 = vpow.pop %v731
    %v733 = vmul.f32 %v656, 1.442695
    %v734 = vpow.pop %v733
    %v735 = vmul.f32 %v657, 1.442695
    %v736 = vpow.pop %v735
    %v737 = vmul.f32 %v658, 1.442695
    %v738 = vpow.pop %v737
    %v739 = vmul.f32 %v659, 1.442695
    %v740 = vpow.pop %v739
    %v741 = vmul.f32 %v660, 1.442695
    %v742 = vpow.pop %v741
    %v743 = vmul.f32 %v661, 1.442695
    %v744 = vpow.pop %v743
    %v745 = vmul.f32 %v662, 1.442695
    %v746 = vpow.pop %v745
    %v747 = vmul.f32 %v663, 1.442695
    %v748 = vpow.pop %v747
    %v749 = vmul.f32 %v664, 1.442695
    %v750 = vpow.pop %v749
    %v751 = vmul.f32 %v665, 1.442695
    %v752 = vpow.pop %v751
    %v753 = vmul.f32 %v666, 1.442695
    %v754 = vpow.pop %v753
    %v755 = vmul.f32 %v667, 1.442695
    %v756 = vpow.pop %v755
    %v757 = vmul.f32 %v668, 1.442695
    %v758 = vpow.pop %v757
    %v759 = vmul.f32 %v669, 1.442695
    %v760 = vpow.pop %v759
    %v761 = vmul.f32 %v670, 1.442695
    %v762 = vpow.pop %v761
    %v763 = vmul.f32 %v671, 1.442695
    %v764 = vpow.pop %v763
    %v765 = vmul.f32 %v672, 1.442695
    %v766 = vpow.pop %v765
    %v767 = vmul.f32 %v673, 1.442695
    %v768 = vpow.pop %v767
    %v769 = vmul.f32 %v674, 1.442695
    %v770 = vpow.pop %v769
    %v771 = vmul.f32 %v675, 1.442695
    %v772 = vpow.pop %v771
    %v773 = vmul.f32 %v676, 1.442695
    %v774 = vpow.pop %v773
    %v775 = vmul.f32 %v677, 1.442695
    %v776 = vpow.pop %v775
    %v777 = vmul.f32 %v678, 1.442695
    %v778 = vpow.pop %v777
    %v779 = vmul.f32 %v679, 1.442695
    %v780 = vpow.pop %v779
    %v781 = vmul.f32 %v680, 1.442695
    %v782 = vpow.pop %v781
    %v783 = vmul.f32 %v681, 1.442695
    %v784 = vpow.pop %v783
    %v785 = vmul.f32 %v682, 1.442695
    %v786 = vpow.pop %v785
    %v787 = vmul.f32 %v683, 1.442695
    %v788 = vpow.pop %v787
    %v789 = vmul.f32 %v684, 1.442695
    %v790 = vpow.pop %v789
    %v791 = vmul.f32 %v685, 1.442695
    %v792 = vpow.pop %v791
    %v793 = vmul.f32 %v686, 1.442695
    %v794 = vpow.pop %v793
    %v795 = vmul.f32 %v687, 1.442695
    %v796 = vpow.pop %v795
    %v797 = vmul.f32 %v688, 1.442695
    %v798 = vpow.pop %v797
    %v799 = vmul.f32 %v689, 1.442695
    %v800 = vpow.pop %v799
    %v801 = vmul.f32 %v690, 1.442695
    %v802 = vpow.pop %v801
    %v803 = vmul.f32 %v691, 1.442695
    %v804 = vpow.pop %v803
    %v805 = vmul.f32 %v692, 1.442695
    %v806 = vpow.pop %v805
    %v807 = vmul.f32 %v693, 1.442695
    %v808 = vpow.pop %v807
    %v809 = vmul.f32 %v694, 1.442695
    %v810 = vpow.pop %v809
    %v811 = vmul.f32 %v695, 1.442695
    %v812 = vpow.pop %v811
    %v813 = vmul.f32 %v696, 1.442695
    %v814 = vpow.pop %v813
    %v815 = vmul.f32 %v697, 1.442695
    %v816 = vpow.pop %v815
    %v817 = vmul.f32 %v698, 1.442695
    %v818 = vpow.pop %v817
    %v819 = vmul.f32 %v699, 1.442695
    %v820 = vpow.pop %v819
    %v821 = vmul.f32 %v700, 1.442695
    %v822 = vpow.pop %v821
    %v823 = vmul.f32 %v701, 1.442695
    %v824 = vpow.pop %v823
    %v825 = vmul.f32 %v702, 1.442695
    %v826 = vpow.pop %v825
    %v827 = vmul.f32 %v703, 1.442695
    %v828 = vpow.pop %v827
    %v829 = vmul.f32 %v704, 1.442695
    %v830 = vpow.pop %v829
    %v831 = vmul.f32 %v705, 1.442695
    %v832 = vpow.pop %v831
    %v833 = vmul.f32 %v706, 1.442695
    %v834 = vpow.pop %v833
    %v835 = vadd.f32 %v708, 1.0
    %v836 = vadd.f32 %v710, 1.0
    %v837 = vadd.f32 %v712, 1.0
    %v838 = vadd.f32 %v714, 1.0
    %v839 = vadd.f32 %v716, 1.0
    %v840 = vadd.f32 %v718, 1.0
    %v841 = vadd.f32 %v720, 1.0
    %v842 = vadd.f32 %v722, 1.0
    %v843 = vadd.f32 %v724, 1.0
    %v844 = vadd.f32 %v726, 1.0
    %v845 = vadd.f32 %v728, 1.0
    %v846 = vadd.f32 %v730, 1.0
    %v847 = vadd.f32 %v732, 1.0
    %v848 = vadd.f32 %v734, 1.0
    %v849 = vadd.f32 %v736, 1.0
    %v850 = vadd.f32 %v738, 1.0
    %v851 = vadd.f32 %v740, 1.0
    %v852 = vadd.f32 %v742, 1.0
    %v853 = vadd.f32 %v744, 1.0
    %v854 = vadd.f32 %v746, 1.0
    %v855 = vadd.f32 %v748, 1.0
    %v856 = vadd.f32 %v750, 1.0
    %v857 = vadd.f32 %v752, 1.0
    %v858 = vadd.f32 %v754, 1.0
    %v859 = vadd.f32 %v756, 1.0
    %v860 = vadd.f32 %v758, 1.0
    %v861 = vadd.f32 %v760, 1.0
    %v862 = vadd.f32 %v762, 1.0
    %v863 = vadd.f32 %v764, 1.0
    %v864 = vadd.f32 %v766, 1.0
    %v865 = vadd.f32 %v768, 1.0
    %v866 = vadd.f32 %v770, 1.0
    %v867 = vadd.f32 %v772, 1.0
    %v868 = vadd.f32 %v774, 1.0
    %v869 = vadd.f32 %v776, 1.0
    %v870 = vadd.f32 %v778, 1.0
    %v871 = vadd.f32 %v780, 1.0
    %v872 = vadd.f32 %v782, 1.0
    %v873 = vadd.f32 %v784, 1.0
    %v874 = vadd.f32 %v786, 1.0
    %v875 = vadd.f32 %v788, 1.0
    %v876 = vadd.f32 %v790, 1.0
    %v877 = vadd.f32 %v792, 1.0
    %v878 = vadd.f32 %v794, 1.0
    %v879 = vadd.f32 %v796, 1.0
    %v880 = vadd.f32 %v798, 1.0
    %v881 = vadd.f32 %v800, 1.0
    %v882 = vadd.f32 %v802, 1.0
    %v883 = vadd.f32 %v804, 1.0
    %v884 = vadd.f32 %v806, 1.0
    %v885 = vadd.f32 %v808, 1.0
    %v886 = vadd.f32 %v810, 1.0
    %v887 = vadd.f32 %v812, 1.0
    %v888 = vadd.f32 %v814, 1.0
    %v889 = vadd.f32 %v816, 1.0
    %v890 = vadd.f32 %v818, 1.0
    %v891 = vadd.f32 %v820, 1.0
    %v892 = vadd.f32 %v822, 1.0
    %v893 = vadd.f32 %v824, 1.0
    %v894 = vadd.f32 %v826, 1.0
    %v895 = vadd.f32 %v828, 1.0
    %v896 = vadd.f32 %v830, 1.0
    %v897 = vadd.f32 %v832, 1.0
    %v898 = vadd.f32 %v834, 1.0
    %v899 = vlog2.pop %v835
    %v900 = vmul.f32 %v899, 0.6931472
    %v901 = vlog2.pop %v836
    %v902 = vmul.f32 %v901, 0.6931472
    %v903 = vlog2.pop %v837
    %v904 = vmul.f32 %v903, 0.6931472
    %v905 = vlog2.pop %v838
    %v906 = vmul.f32 %v905, 0.6931472
    %v907 = vlog2.pop %v839
    %v908 = vmul.f32 %v907, 0.6931472
    %v909 = vlog2.pop %v840
    %v910 = vmul.f32 %v909, 0.6931472
    %v911 = vlog2.pop %v841
    %v912 = vmul.f32 %v911, 0.6931472
    %v913 = vlog2.pop %v842
    %v914 = vmul.f32 %v913, 0.6931472
    %v915 = vlog2.pop %v843
    %v916 = vmul.f32 %v915, 0.6931472
    %v917 = vlog2.pop %v844
    %v918 = vmul.f32 %v917, 0.6931472
    %v919 = vlog2.pop %v845
    %v920 = vmul.f32 %v919, 0.6931472
    %v921 = vlog2.pop %v846
    %v922 = vmul.f32 %v921, 0.6931472
    %v923 = vlog2.pop %v847
    %v924 = vmul.f32 %v923, 0.6931472
    %v925 = vlog2.pop %v848
    %v926 = vmul.f32 %v925, 0.6931472
    %v927 = vlog2.pop %v849
    %v928 = vmul.f32 %v927, 0.6931472
    %v929 = vlog2.pop %v850
    %v930 = vmul.f32 %v929, 0.6931472
    %v931 = vlog2.pop %v851
    %v932 = vmul.f32 %v931, 0.6931472
    %v933 = vlog2.pop %v852
    %v934 = vmul.f32 %v933, 0.6931472
    %v935 = vlog2.pop %v853
    %v936 = vmul.f32 %v935, 0.6931472
    %v937 = vlog2.pop %v854
    %v938 = vmul.f32 %v937, 0.6931472
    %v939 = vlog2.pop %v855
    %v940 = vmul.f32 %v939, 0.6931472
    %v941 = vlog2.pop %v856
    %v942 = vmul.f32 %v941, 0.6931472
    %v943 = vlog2.pop %v857
    %v944 = vmul.f32 %v943, 0.6931472
    %v945 = vlog2.pop %v858
    %v946 = vmul.f32 %v945, 0.6931472
    %v947 = vlog2.pop %v859
    %v948 = vmul.f32 %v947, 0.6931472
    %v949 = vlog2.pop %v860
    %v950 = vmul.f32 %v949, 0.6931472
    %v951 = vlog2.pop %v861
    %v952 = vmul.f32 %v951, 0.6931472
    %v953 = vlog2.pop %v862
    %v954 = vmul.f32 %v953, 0.6931472
    %v955 = vlog2.pop %v863
    %v956 = vmul.f32 %v955, 0.6931472
    %v957 = vlog2.pop %v864
    %v958 = vmul.f32 %v957, 0.6931472
    %v959 = vlog2.pop %v865
    %v960 = vmul.f32 %v959, 0.6931472
    %v961 = vlog2.pop %v866
    %v962 = vmul.f32 %v961, 0.6931472
    %v963 = vlog2.pop %v867
    %v964 = vmul.f32 %v963, 0.6931472
    %v965 = vlog2.pop %v868
    %v966 = vmul.f32 %v965, 0.6931472
    %v967 = vlog2.pop %v869
    %v968 = vmul.f32 %v967, 0.6931472
    %v969 = vlog2.pop %v870
    %v970 = vmul.f32 %v969, 0.6931472
    %v971 = vlog2.pop %v871
    %v972 = vmul.f32 %v971, 0.6931472
    %v973 = vlog2.pop %v872
    %v974 = vmul.f32 %v973, 0.6931472
    %v975 = vlog2.pop %v873
    %v976 = vmul.f32 %v975, 0.6931472
    %v977 = vlog2.pop %v874
    %v978 = vmul.f32 %v977, 0.6931472
    %v979 = vlog2.pop %v875
    %v980 = vmul.f32 %v979, 0.6931472
    %v981 = vlog2.pop %v876
    %v982 = vmul.f32 %v981, 0.6931472
    %v983 = vlog2.pop %v877
    %v984 = vmul.f32 %v983, 0.6931472
    %v985 = vlog2.pop %v878
    %v986 = vmul.f32 %v985, 0.6931472
    %v987 = vlog2.pop %v879
    %v988 = vmul.f32 %v987, 0.6931472
    %v989 = vlog2.pop %v880
    %v990 = vmul.f32 %v989, 0.6931472
    %v991 = vlog2.pop %v881
    %v992 = vmul.f32 %v991, 0.6931472
    %v993 = vlog2.pop %v882
    %v994 = vmul.f32 %v993, 0.6931472
    %v995 = vlog2.pop %v883
    %v996 = vmul.f32 %v995, 0.6931472
    %v997 = vlog2.pop %v884
    %v998 = vmul.f32 %v997, 0.6931472
    %v999 = vlog2.pop %v885
    %v1000 = vmul.f32 %v999, 0.6931472
    %v1001 = vlog2.pop %v886
    %v1002 = vmul.f32 %v1001, 0.6931472
    %v1003 = vlog2.pop %v887
    %v1004 = vmul.f32 %v1003, 0.6931472
    %v1005 = vlog2.pop %v888
    %v1006 = vmul.f32 %v1005, 0.6931472
    %v1007 = vlog2.pop %v889
    %v1008 = vmul.f32 %v1007, 0.6931472
    %v1009 = vlog2.pop %v890
    %v1010 = vmul.f32 %v1009, 0.6931472
    %v1011 = vlog2.pop %v891
    %v1012 = vmul.f32 %v1011, 0.6931472
    %v1013 = vlog2.pop %v892
    %v1014 = vmul.f32 %v1013, 0.6931472
    %v1015 = vlog2.pop %v893
    %v1016 = vmul.f32 %v1015, 0.6931472
    %v1017 = vlog2.pop %v894
    %v1018 = vmul.f32 %v1017, 0.6931472
    %v1019 = vlog2.pop %v895
    %v1020 = vmul.f32 %v1019, 0.6931472
    %v1021 = vlog2.pop %v896
    %v1022 = vmul.f32 %v1021, 0.6931472
    %v1023 = vlog2.pop %v897
    %v1024 = vmul.f32 %v1023, 0.6931472
    %v1025 = vlog2.pop %v898
    %v1026 = vmul.f32 %v1025, 0.6931472
    %v1027 = vadd.f32 %v515, %v900
    %v1028 = vadd.f32 %v516, %v902
    %v1029 = vadd.f32 %v517, %v904
    %v1030 = vadd.f32 %v518, %v906
    %v1031 = vadd.f32 %v519, %v908
    %v1032 = vadd.f32 %v520, %v910
    %v1033 = vadd.f32 %v521, %v912
    %v1034 = vadd.f32 %v522, %v914
    %v1035 = vadd.f32 %v523, %v916
    %v1036 = vadd.f32 %v524, %v918
    %v1037 = vadd.f32 %v525, %v920
    %v1038 = vadd.f32 %v526, %v922
    %v1039 = vadd.f32 %v527, %v924
    %v1040 = vadd.f32 %v528, %v926
    %v1041 = vadd.f32 %v529, %v928
    %v1042 = vadd.f32 %v530, %v930
    %v1043 = vadd.f32 %v531, %v932
    %v1044 = vadd.f32 %v532, %v934
    %v1045 = vadd.f32 %v533, %v936
    %v1046 = vadd.f32 %v534, %v938
    %v1047 = vadd.f32 %v535, %v940
    %v1048 = vadd.f32 %v536, %v942
    %v1049 = vadd.f32 %v537, %v944
    %v1050 = vadd.f32 %v538, %v946
    %v1051 = vadd.f32 %v539, %v948
    %v1052 = vadd.f32 %v540, %v950
    %v1053 = vadd.f32 %v541, %v952
    %v1054 = vadd.f32 %v542, %v954
    %v1055 = vadd.f32 %v543, %v956
    %v1056 = vadd.f32 %v544, %v958
    %v1057 = vadd.f32 %v545, %v960
    %v1058 = vadd.f32 %v546, %v962
    %v1059 = vadd.f32 %v547, %v964
    %v1060 = vadd.f32 %v548, %v966
    %v1061 = vadd.f32 %v549, %v968
    %v1062 = vadd.f32 %v550, %v970
    %v1063 = vadd.f32 %v551, %v972
    %v1064 = vadd.f32 %v552, %v974
    %v1065 = vadd.f32 %v553, %v976
    %v1066 = vadd.f32 %v554, %v978
    %v1067 = vadd.f32 %v555, %v980
    %v1068 = vadd.f32 %v556, %v982
    %v1069 = vadd.f32 %v557, %v984
    %v1070 = vadd.f32 %v558, %v986
    %v1071 = vadd.f32 %v559, %v988
    %v1072 = vadd.f32 %v560, %v990
    %v1073 = vadd.f32 %v561, %v992
    %v1074 = vadd.f32 %v562, %v994
    %v1075 = vadd.f32 %v563, %v996
    %v1076 = vadd.f32 %v564, %v998
    %v1077 = vadd.f32 %v565, %v1000
    %v1078 = vadd.f32 %v566, %v1002
    %v1079 = vadd.f32 %v567, %v1004
    %v1080 = vadd.f32 %v568, %v1006
    %v1081 = vadd.f32 %v569, %v1008
    %v1082 = vadd.f32 %v570, %v1010
    %v1083 = vadd.f32 %v571, %v1012
    %v1084 = vadd.f32 %v572, %v1014
    %v1085 = vadd.f32 %v573, %v1016
    %v1086 = vadd.f32 %v574, %v1018
    %v1087 = vadd.f32 %v575, %v1020
    %v1088 = vadd.f32 %v576, %v1022
    %v1089 = vadd.f32 %v577, %v1024
    %v1090 = vadd.f32 %v578, %v1026
    %v1091 = vsel %vm259, 0.25, 0.75
    %v1092 = vsel %vm260, 0.25, 0.75
    %v1093 = vsel %vm261, 0.25, 0.75
    %v1094 = vsel %vm262, 0.25, 0.75
    %v1095 = vsel %vm263, 0.25, 0.75
    %v1096 = vsel %vm264, 0.25, 0.75
    %v1097 = vsel %vm265, 0.25, 0.75
    %v1098 = vsel %vm266, 0.25, 0.75
    %v1099 = vsel %vm267, 0.25, 0.75
    %v1100 = vsel %vm268, 0.25, 0.75
    %v1101 = vsel %vm269, 0.25, 0.75
    %v1102 = vsel %vm270, 0.25, 0.75
    %v1103 = vsel %vm271, 0.25, 0.75
    %v1104 = vsel %vm272, 0.25, 0.75
    %v1105 = vsel %vm273, 0.25, 0.75
    %v1106 = vsel %vm274, 0.25, 0.75
    %v1107 = vsel %vm275, 0.25, 0.75
    %v1108 = vsel %vm276, 0.25, 0.75
    %v1109 = vsel %vm277, 0.25, 0.75
    %v1110 = vsel %vm278, 0.25, 0.75
    %v1111 = vsel %vm279, 0.25, 0.75
    %v1112 = vsel %vm280, 0.25, 0.75
    %v1113 = vsel %vm281, 0.25, 0.75
    %v1114 = vsel %vm282, 0.25, 0.75
    %v1115 = vsel %vm283, 0.25, 0.75
    %v1116 = vsel %vm284, 0.25, 0.75
    %v1117 = vsel %vm285, 0.25, 0.75
    %v1118 = vsel %vm286, 0.25, 0.75
    %v1119 = vsel %vm287, 0.25, 0.75
    %v1120 = vsel %vm288, 0.25, 0.75
    %v1121 = vsel %vm289, 0.25, 0.75
    %v1122 = vsel %vm290, 0.25, 0.75
    %v1123 = vsel %vm291, 0.25, 0.75
    %v1124 = vsel %vm292, 0.25, 0.75
    %v1125 = vsel %vm293, 0.25, 0.75
    %v1126 = vsel %vm294, 0.25, 0.75
    %v1127 = vsel %vm295, 0.25, 0.75
    %v1128 = vsel %vm296, 0.25, 0.75
    %v1129 = vsel %vm297, 0.25, 0.75
    %v1130 = vsel %vm298, 0.25, 0.75
    %v1131 = vsel %vm299, 0.25, 0.75
    %v1132 = vsel %vm300, 0.25, 0.75
    %v1133 = vsel %vm301, 0.25, 0.75
    %v1134 = vsel %vm302, 0.25, 0.75
    %v1135 = vsel %vm303, 0.25, 0.75
    %v1136 = vsel %vm304, 0.25, 0.75
    %v1137 = vsel %vm305, 0.25, 0.75
    %v1138 = vsel %vm306, 0.25, 0.75
    %v1139 = vsel %vm307, 0.25, 0.75
    %v1140 = vsel %vm308, 0.25, 0.75
    %v1141 = vsel %vm309, 0.25, 0.75
    %v1142 = vsel %vm310, 0.25, 0.75
    %v1143 = vsel %vm311, 0.25, 0.75
    %v1144 = vsel %vm312, 0.25, 0.75
    %v1145 = vsel %vm313, 0.25, 0.75
    %v1146 = vsel %vm314, 0.25, 0.75
    %v1147 = vsel %vm315, 0.25, 0.75
    %v1148 = vsel %vm316, 0.25, 0.75
    %v1149 = vsel %vm317, 0.25, 0.75
    %v1150 = vsel %vm318, 0.25, 0.75
    %v1151 = vsel %vm319, 0.25, 0.75
    %v1152 = vsel %vm320, 0.25, 0.75
    %v1153 = vsel %vm321, 0.25, 0.75
    %v1154 = vsel %vm322, 0.25, 0.75
    %v1155 = vmul.f32 %v1091, %v1027
    %v1156 = vmul.f32 %v1092, %v1028
    %v1157 = vmul.f32 %v1093, %v1029
    %v1158 = vmul.f32 %v1094, %v1030
    %v1159 = vmul.f32 %v1095, %v1031
    %v1160 = vmul.f32 %v1096, %v1032
    %v1161 = vmul.f32 %v1097, %v1033
    %v1162 = vmul.f32 %v1098, %v1034
    %v1163 = vmul.f32 %v1099, %v1035
    %v1164 = vmul.f32 %v1100, %v1036
    %v1165 = vmul.f32 %v1101, %v1037
    %v1166 = vmul.f32 %v1102, %v1038
    %v1167 = vmul.f32 %v1103, %v1039
    %v1168 = vmul.f32 %v1104, %v1040
    %v1169 = vmul.f32 %v1105, %v1041
    %v1170 = vmul.f32 %v1106, %v1042
    %v1171 = vmul.f32 %v1107, %v1043
    %v1172 = vmul.f32 %v1108, %v1044
    %v1173 = vmul.f32 %v1109, %v1045
    %v1174 = vmul.f32 %v1110, %v1046
    %v1175 = vmul.f32 %v1111, %v1047
    %v1176 = vmul.f32 %v1112, %v1048
    %v1177 = vmul.f32 %v1113, %v1049
    %v1178 = vmul.f32 %v1114, %v1050
    %v1179 = vmul.f32 %v1115, %v1051
    %v1180 = vmul.f32 %v1116, %v1052
    %v1181 = vmul.f32 %v1117, %v1053
    %v1182 = vmul.f32 %v1118, %v1054
    %v1183 = vmul.f32 %v1119, %v1055
    %v1184 = vmul.f32 %v1120, %v1056
    %v1185 = vmul.f32 %v1121, %v1057
    %v1186 = vmul.f32 %v1122, %v1058
    %v1187 = vmul.f32 %v1123, %v1059
    %v1188 = vmul.f32 %v1124, %v1060
    %v1189 = vmul.f32 %v1125, %v1061
    %v1190 = vmul.f32 %v1126, %v1062
    %v1191 = vmul.f32 %v1127, %v1063
    %v1192 = vmul.f32 %v1128, %v1064
    %v1193 = vmul.f32 %v1129, %v1065
    %v1194 = vmul.f32 %v1130, %v1066
    %v1195 = vmul.f32 %v1131, %v1067
    %v1196 = vmul.f32 %v1132, %v1068
    %v1197 = vmul.f32 %v1133, %v1069
    %v1198 = vmul.f32 %v1134, %v1070
    %v1199 = vmul.f32 %v1135, %v1071
    %v1200 = vmul.f32 %v1136, %v1072
    %v1201 = vmul.f32 %v1137, %v1073
    %v1202 = vmul.f32 %v1138, %v1074
    %v1203 = vmul.f32 %v1139, %v1075
    %v1204 = vmul.f32 %v1140, %v1076
    %v1205 = vmul.f32 %v1141, %v1077
    %v1206 = vmul.f32 %v1142, %v1078
    %v1207 = vmul.f32 %v1143, %v1079
    %v1208 = vmul.f32 %v1144, %v1080
    %v1209 = vmul.f32 %v1145, %v1081
    %v1210 = vmul.f32 %v1146, %v1082
    %v1211 = vmul.f32 %v1147, %v1083
    %v1212 = vmul.f32 %v1148, %v1084
    %v1213 = vmul.f32 %v1149, %v1085
    %v1214 = vmul.f32 %v1150, %v1086
    %v1215 = vmul.f32 %v1151, %v1087
    %v1216 = vmul.f32 %v1152, %v1088
    %v1217 = vmul.f32 %v1153, %v1089
    %v1218 = vmul.f32 %v1154, %v1090
    %v1219 = vsub.f32 0.0, %v1155
    %v1220 = vsub.f32 0.0, %v1156
    %v1221 = vsub.f32 0.0, %v1157
    %v1222 = vsub.f32 0.0, %v1158
    %v1223 = vsub.f32 0.0, %v1159
    %v1224 = vsub.f32 0.0, %v1160
    %v1225 = vsub.f32 0.0, %v1161
    %v1226 = vsub.f32 0.0, %v1162
    %v1227 = vsub.f32 0.0, %v1163
    %v1228 = vsub.f32 0.0, %v1164
    %v1229 = vsub.f32 0.0, %v1165
    %v1230 = vsub.f32 0.0, %v1166
    %v1231 = vsub.f32 0.0, %v1167
    %v1232 = vsub.f32 0.0, %v1168
    %v1233 = vsub.f32 0.0, %v1169
    %v1234 = vsub.f32 0.0, %v1170
    %v1235 = vsub.f32 0.0, %v1171
    %v1236 = vsub.f32 0.0, %v1172
    %v1237 = vsub.f32 0.0, %v1173
    %v1238 = vsub.f32 0.0, %v1174
    %v1239 = vsub.f32 0.0, %v1175
    %v1240 = vsub.f32 0.0, %v1176
    %v1241 = vsub.f32 0.0, %v1177
    %v1242 = vsub.f32 0.0, %v1178
    %v1243 = vsub.f32 0.0, %v1179
    %v1244 = vsub.f32 0.0, %v1180
    %v1245 = vsub.f32 0.0, %v1181
    %v1246 = vsub.f32 0.0, %v1182
    %v1247 = vsub.f32 0.0, %v1183
    %v1248 = vsub.f32 0.0, %v1184
    %v1249 = vsub.f32 0.0, %v1185
    %v1250 = vsub.f32 0.0, %v1186
    %v1251 = vsub.f32 0.0, %v1187
    %v1252 = vsub.f32 0.0, %v1188
    %v1253 = vsub.f32 0.0, %v1189
    %v1254 = vsub.f32 0.0, %v1190
    %v1255 = vsub.f32 0.0, %v1191
    %v1256 = vsub.f32 0.0, %v1192
    %v1257 = vsub.f32 0.0, %v1193
    %v1258 = vsub.f32 0.0, %v1194
    %v1259 = vsub.f32 0.0, %v1195
    %v1260 = vsub.f32 0.0, %v1196
    %v1261 = vsub.f32 0.0, %v1197
    %v1262 = vsub.f32 0.0, %v1198
    %v1263 = vsub.f32 0.0, %v1199
    %v1264 = vsub.f32 0.0, %v1200
    %v1265 = vsub.f32 0.0, %v1201
    %v1266 = vsub.f32 0.0, %v1202
    %v1267 = vsub.f32 0.0, %v1203
    %v1268 = vsub.f32 0.0, %v1204
    %v1269 = vsub.f32 0.0, %v1205
    %v1270 = vsub.f32 0.0, %v1206
    %v1271 = vsub.f32 0.0, %v1207
    %v1272 = vsub.f32 0.0, %v1208
    %v1273 = vsub.f32 0.0, %v1209
    %v1274 = vsub.f32 0.0, %v1210
    %v1275 = vsub.f32 0.0, %v1211
    %v1276 = vsub.f32 0.0, %v1212
    %v1277 = vsub.f32 0.0, %v1213
    %v1278 = vsub.f32 0.0, %v1214
    %v1279 = vsub.f32 0.0, %v1215
    %v1280 = vsub.f32 0.0, %v1216
    %v1281 = vsub.f32 0.0, %v1217
    %v1282 = vsub.f32 0.0, %v1218
    %v1283 = vmul.f32 %v1219, 1.442695
    %v1284 = vpow.pop %v1283
    %v1285 = vmul.f32 %v1220, 1.442695
    %v1286 = vpow.pop %v1285
    %v1287 = vmul.f32 %v1221, 1.442695
    %v1288 = vpow.pop %v1287
    %v1289 = vmul.f32 %v1222, 1.442695
    %v1290 = vpow.pop %v1289
    %v1291 = vmul.f32 %v1223, 1.442695
    %v1292 = vpow.pop %v1291
    %v1293 = vmul.f32 %v1224, 1.442695
    %v1294 = vpow.pop %v1293
    %v1295 = vmul.f32 %v1225, 1.442695
    %v1296 = vpow.pop %v1295
    %v1297 = vmul.f32 %v1226, 1.442695
    %v1298 = vpow.pop %v1297
    %v1299 = vmul.f32 %v1227, 1.442695
    %v1300 = vpow.pop %v1299
    %v1301 = vmul.f32 %v1228, 1.442695
    %v1302 = vpow.pop %v1301
    %v1303 = vmul.f32 %v1229, 1.442695
    %v1304 = vpow.pop %v1303
    %v1305 = vmul.f32 %v1230, 1.442695
    %v1306 = vpow.pop %v1305
    %v1307 = vmul.f32 %v1231, 1.442695
    %v1308 = vpow.pop %v1307
    %v1309 = vmul.f32 %v1232, 1.442695
    %v1310 = vpow.pop %v1309
    %v1311 = vmul.f32 %v1233, 1.442695
    %v1312 = vpow.pop %v1311
    %v1313 = vmul.f32 %v1234, 1.442695
    %v1314 = vpow.pop %v1313
    %v1315 = vmul.f32 %v1235, 1.442695
    %v1316 = vpow.pop %v1315
    %v1317 = vmul.f32 %v1236, 1.442695
    %v1318 = vpow.pop %v1317
    %v1319 = vmul.f32 %v1237, 1.442695
    %v1320 = vpow.pop %v1319
    %v1321 = vmul.f32 %v1238, 1.442695
    %v1322 = vpow.pop %v1321
    %v1323 = vmul.f32 %v1239, 1.442695
    %v1324 = vpow.pop %v1323
    %v1325 = vmul.f32 %v1240, 1.442695
    %v1326 = vpow.pop %v1325
    %v1327 = vmul.f32 %v1241, 1.442695
    %v1328 = vpow.pop %v1327
    %v1329 = vmul.f32 %v1242, 1.442695
    %v1330 = vpow.pop %v1329
    %v1331 = vmul.f32 %v1243, 1.442695
    %v1332 = vpow.pop %v1331
    %v1333 = vmul.f32 %v1244, 1.442695
    %v1334 = vpow.pop %v1333
    %v1335 = vmul.f32 %v1245, 1.442695
    %v1336 = vpow.pop %v1335
    %v1337 = vmul.f32 %v1246, 1.442695
    %v1338 = vpow.pop %v1337
    %v1339 = vmul.f32 %v1247, 1.442695
    %v1340 = vpow.pop %v1339
    %v1341 = vmul.f32 %v1248, 1.442695
    %v1342 = vpow.pop %v1341
    %v1343 = vmul.f32 %v1249, 1.442695
    %v1344 = vpow.pop %v1343
    %v1345 = vmul.f32 %v1250, 1.442695
    %v1346 = vpow.pop %v1345
    %v1347 = vmul.f32 %v1251, 1.442695
    %v1348 = vpow.pop %v1347
    %v1349 = vmul.f32 %v1252, 1.442695
    %v1350 = vpow.pop %v1349
    %v1351 = vmul.f32 %v1253, 1.442695
    %v1352 = vpow.pop %v1351
    %v1353 = vmul.f32 %v1254, 1.442695
    %v1354 = vpow.pop %v1353
    %v1355 = vmul.f32 %v1255, 1.442695
    %v1356 = vpow.pop %v1355
    %v1357 = vmul.f32 %v1256, 1.442695
    %v1358 = vpow.pop %v1357
    %v1359 = vmul.f32 %v1257, 1.442695
    %v1360 = vpow.pop %v1359
    %v1361 = vmul.f32 %v1258, 1.442695
    %v1362 = vpow.pop %v1361
    %v1363 = vmul.f32 %v1259, 1.442695
    %v1364 = vpow.pop %v1363
    %v1365 = vmul.f32 %v1260, 1.442695
    %v1366 = vpow.pop %v1365
    %v1367 = vmul.f32 %v1261, 1.442695
    %v1368 = vpow.pop %v1367
    %v1369 = vmul.f32 %v1262, 1.442695
    %v1370 = vpow.pop %v1369
    %v1371 = vmul.f32 %v1263, 1.442695
    %v1372 = vpow.pop %v1371
    %v1373 = vmul.f32 %v1264, 1.442695
    %v1374 = vpow.pop %v1373
    %v1375 = vmul.f32 %v1265, 1.442695
    %v1376 = vpow.pop %v1375
    %v1377 = vmul.f32 %v1266, 1.442695
    %v1378 = vpow.pop %v1377
    %v1379 = vmul.f32 %v1267, 1.442695
    %v1380 = vpow.pop %v1379
    %v1381 = vmul.f32 %v1268, 1.442695
    %v1382 = vpow.pop %v1381
    %v1383 = vmul.f32 %v1269, 1.442695
    %v1384 = vpow.pop %v1383
    %v1385 = vmul.f32 %v1270, 1.442695
    %v1386 = vpow.pop %v1385
    %v1387 = vmul.f32 %v1271, 1.442695
    %v1388 = vpow.pop %v1387
    %v1389 = vmul.f32 %v1272, 1.442695
    %v1390 = vpow.pop %v1389
    %v1391 = vmul.f32 %v1273, 1.442695
    %v1392 = vpow.pop %v1391
    %v1393 = vmul.f32 %v1274, 1.442695
    %v1394 = vpow.pop %v1393
    %v1395 = vmul.f32 %v1275, 1.442695
    %v1396 = vpow.pop %v1395
    %v1397 = vmul.f32 %v1276, 1.442695
    %v1398 = vpow.pop %v1397
    %v1399 = vmul.f32 %v1277, 1.442695
    %v1400 = vpow.pop %v1399
    %v1401 = vmul.f32 %v1278, 1.442695
    %v1402 = vpow.pop %v1401
    %v1403 = vmul.f32 %v1279, 1.442695
    %v1404 = vpow.pop %v1403
    %v1405 = vmul.f32 %v1280, 1.442695
    %v1406 = vpow.pop %v1405
    %v1407 = vmul.f32 %v1281, 1.442695
    %v1408 = vpow.pop %v1407
    %v1409 = vmul.f32 %v1282, 1.442695
    %v1410 = vpow.pop %v1409
    %v1411 = vsub.f32 1.0, %v1284
    %v1412 = vsub.f32 1.0, %v1286
    %v1413 = vsub.f32 1.0, %v1288
    %v1414 = vsub.f32 1.0, %v1290
    %v1415 = vsub.f32 1.0, %v1292
    %v1416 = vsub.f32 1.0, %v1294
    %v1417 = vsub.f32 1.0, %v1296
    %v1418 = vsub.f32 1.0, %v1298
    %v1419 = vsub.f32 1.0, %v1300
    %v1420 = vsub.f32 1.0, %v1302
    %v1421 = vsub.f32 1.0, %v1304
    %v1422 = vsub.f32 1.0, %v1306
    %v1423 = vsub.f32 1.0, %v1308
    %v1424 = vsub.f32 1.0, %v1310
    %v1425 = vsub.f32 1.0, %v1312
    %v1426 = vsub.f32 1.0, %v1314
    %v1427 = vsub.f32 1.0, %v1316
    %v1428 = vsub.f32 1.0, %v1318
    %v1429 = vsub.f32 1.0, %v1320
    %v1430 = vsub.f32 1.0, %v1322
    %v1431 = vsub.f32 1.0, %v1324
    %v1432 = vsub.f32 1.0, %v1326
    %v1433 = vsub.f32 1.0, %v1328
    %v1434 = vsub.f32 1.0, %v1330
    %v1435 = vsub.f32 1.0, %v1332
    %v1436 = vsub.f32 1.0, %v1334
    %v1437 = vsub.f32 1.0, %v1336
    %v1438 = vsub.f32 1.0, %v1338
    %v1439 = vsub.f32 1.0, %v1340
    %v1440 = vsub.f32 1.0, %v1342
    %v1441 = vsub.f32 1.0, %v1344
    %v1442 = vsub.f32 1.0, %v1346
    %v1443 = vsub.f32 1.0, %v1348
    %v1444 = vsub.f32 1.0, %v1350
    %v1445 = vsub.f32 1.0, %v1352
    %v1446 = vsub.f32 1.0, %v1354
    %v1447 = vsub.f32 1.0, %v1356
    %v1448 = vsub.f32 1.0, %v1358
    %v1449 = vsub.f32 1.0, %v1360
    %v1450 = vsub.f32 1.0, %v1362
    %v1451 = vsub.f32 1.0, %v1364
    %v1452 = vsub.f32 1.0, %v1366
    %v1453 = vsub.f32 1.0, %v1368
    %v1454 = vsub.f32 1.0, %v1370
    %v1455 = vsub.f32 1.0, %v1372
    %v1456 = vsub.f32 1.0, %v1374
    %v1457 = vsub.f32 1.0, %v1376
    %v1458 = vsub.f32 1.0, %v1378
    %v1459 = vsub.f32 1.0, %v1380
    %v1460 = vsub.f32 1.0, %v1382
    %v1461 = vsub.f32 1.0, %v1384
    %v1462 = vsub.f32 1.0, %v1386
    %v1463 = vsub.f32 1.0, %v1388
    %v1464 = vsub.f32 1.0, %v1390
    %v1465 = vsub.f32 1.0, %v1392
    %v1466 = vsub.f32 1.0, %v1394
    %v1467 = vsub.f32 1.0, %v1396
    %v1468 = vsub.f32 1.0, %v1398
    %v1469 = vsub.f32 1.0, %v1400
    %v1470 = vsub.f32 1.0, %v1402
    %v1471 = vsub.f32 1.0, %v1404
    %v1472 = vsub.f32 1.0, %v1406
    %v1473 = vsub.f32 1.0, %v1408
    %v1474 = vsub.f32 1.0, %v1410
    %v1475 = vmul.f32 %v1411, %v1411
    %v1476 = vmul.f32 %v1412, %v1412
    %v1477 = vmul.f32 %v1413, %v1413
    %v1478 = vmul.f32 %v1414, %v1414
    %v1479 = vmul.f32 %v1415, %v1415
    %v1480 = vmul.f32 %v1416, %v1416
    %v1481 = vmul.f32 %v1417, %v1417
    %v1482 = vmul.f32 %v1418, %v1418
    %v1483 = vmul.f32 %v1419, %v1419
    %v1484 = vmul.f32 %v1420, %v1420
    %v1485 = vmul.f32 %v1421, %v1421
    %v1486 = vmul.f32 %v1422, %v1422
    %v1487 = vmul.f32 %v1423, %v1423
    %v1488 = vmul.f32 %v1424, %v1424
    %v1489 = vmul.f32 %v1425, %v1425
    %v1490 = vmul.f32 %v1426, %v1426
    %v1491 = vmul.f32 %v1427, %v1427
    %v1492 = vmul.f32 %v1428, %v1428
    %v1493 = vmul.f32 %v1429, %v1429
    %v1494 = vmul.f32 %v1430, %v1430
    %v1495 = vmul.f32 %v1431, %v1431
    %v1496 = vmul.f32 %v1432, %v1432
    %v1497 = vmul.f32 %v1433, %v1433
    %v1498 = vmul.f32 %v1434, %v1434
    %v1499 = vmul.f32 %v1435, %v1435
    %v1500 = vmul.f32 %v1436, %v1436
    %v1501 = vmul.f32 %v1437, %v1437
    %v1502 = vmul.f32 %v1438, %v1438
    %v1503 = vmul.f32 %v1439, %v1439
    %v1504 = vmul.f32 %v1440, %v1440
    %v1505 = vmul.f32 %v1441, %v1441
    %v1506 = vmul.f32 %v1442, %v1442
    %v1507 = vmul.f32 %v1443, %v1443
    %v1508 = vmul.f32 %v1444, %v1444
    %v1509 = vmul.f32 %v1445, %v1445
    %v1510 = vmul.f32 %v1446, %v1446
    %v1511 = vmul.f32 %v1447, %v1447
    %v1512 = vmul.f32 %v1448, %v1448
    %v1513 = vmul.f32 %v1449, %v1449
    %v1514 = vmul.f32 %v1450, %v1450
    %v1515 = vmul.f32 %v1451, %v1451
    %v1516 = vmul.f32 %v1452, %v1452
    %v1517 = vmul.f32 %v1453, %v1453
    %v1518 = vmul.f32 %v1454, %v1454
    %v1519 = vmul.f32 %v1455, %v1455
    %v1520 = vmul.f32 %v1456, %v1456
    %v1521 = vmul.f32 %v1457, %v1457
    %v1522 = vmul.f32 %v1458, %v1458
    %v1523 = vmul.f32 %v1459, %v1459
    %v1524 = vmul.f32 %v1460, %v1460
    %v1525 = vmul.f32 %v1461, %v1461
    %v1526 = vmul.f32 %v1462, %v1462
    %v1527 = vmul.f32 %v1463, %v1463
    %v1528 = vmul.f32 %v1464, %v1464
    %v1529 = vmul.f32 %v1465, %v1465
    %v1530 = vmul.f32 %v1466, %v1466
    %v1531 = vmul.f32 %v1467, %v1467
    %v1532 = vmul.f32 %v1468, %v1468
    %v1533 = vmul.f32 %v1469, %v1469
    %v1534 = vmul.f32 %v1470, %v1470
    %v1535 = vmul.f32 %v1471, %v1471
    %v1536 = vmul.f32 %v1472, %v1472
    %v1537 = vmul.f32 %v1473, %v1473
    %v1538 = vmul.f32 %v1474, %v1474
    %v1539 = vmul.f32 %v1475, %v1155
    %v1540 = vmul.f32 %v1476, %v1156
    %v1541 = vmul.f32 %v1477, %v1157
    %v1542 = vmul.f32 %v1478, %v1158
    %v1543 = vmul.f32 %v1479, %v1159
    %v1544 = vmul.f32 %v1480, %v1160
    %v1545 = vmul.f32 %v1481, %v1161
    %v1546 = vmul.f32 %v1482, %v1162
    %v1547 = vmul.f32 %v1483, %v1163
    %v1548 = vmul.f32 %v1484, %v1164
    %v1549 = vmul.f32 %v1485, %v1165
    %v1550 = vmul.f32 %v1486, %v1166
    %v1551 = vmul.f32 %v1487, %v1167
    %v1552 = vmul.f32 %v1488, %v1168
    %v1553 = vmul.f32 %v1489, %v1169
    %v1554 = vmul.f32 %v1490, %v1170
    %v1555 = vmul.f32 %v1491, %v1171
    %v1556 = vmul.f32 %v1492, %v1172
    %v1557 = vmul.f32 %v1493, %v1173
    %v1558 = vmul.f32 %v1494, %v1174
    %v1559 = vmul.f32 %v1495, %v1175
    %v1560 = vmul.f32 %v1496, %v1176
    %v1561 = vmul.f32 %v1497, %v1177
    %v1562 = vmul.f32 %v1498, %v1178
    %v1563 = vmul.f32 %v1499, %v1179
    %v1564 = vmul.f32 %v1500, %v1180
    %v1565 = vmul.f32 %v1501, %v1181
    %v1566 = vmul.f32 %v1502, %v1182
    %v1567 = vmul.f32 %v1503, %v1183
    %v1568 = vmul.f32 %v1504, %v1184
    %v1569 = vmul.f32 %v1505, %v1185
    %v1570 = vmul.f32 %v1506, %v1186
    %v1571 = vmul.f32 %v1507, %v1187
    %v1572 = vmul.f32 %v1508, %v1188
    %v1573 = vmul.f32 %v1509, %v1189
    %v1574 = vmul.f32 %v1510, %v1190
    %v1575 = vmul.f32 %v1511, %v1191
    %v1576 = vmul.f32 %v1512, %v1192
    %v1577 = vmul.f32 %v1513, %v1193
    %v1578 = vmul.f32 %v1514, %v1194
    %v1579 = vmul.f32 %v1515, %v1195
    %v1580 = vmul.f32 %v1516, %v1196
    %v1581 = vmul.f32 %v1517, %v1197
    %v1582 = vmul.f32 %v1518, %v1198
    %v1583 = vmul.f32 %v1519, %v1199
    %v1584 = vmul.f32 %v1520, %v1200
    %v1585 = vmul.f32 %v1521, %v1201
    %v1586 = vmul.f32 %v1522, %v1202
    %v1587 = vmul.f32 %v1523, %v1203
    %v1588 = vmul.f32 %v1524, %v1204
    %v1589 = vmul.f32 %v1525, %v1205
    %v1590 = vmul.f32 %v1526, %v1206
    %v1591 = vmul.f32 %v1527, %v1207
    %v1592 = vmul.f32 %v1528, %v1208
    %v1593 = vmul.f32 %v1529, %v1209
    %v1594 = vmul.f32 %v1530, %v1210
    %v1595 = vmul.f32 %v1531, %v1211
    %v1596 = vmul.f32 %v1532, %v1212
    %v1597 = vmul.f32 %v1533, %v1213
    %v1598 = vmul.f32 %v1534, %v1214
    %v1599 = vmul.f32 %v1535, %v1215
    %v1600 = vmul.f32 %v1536, %v1216
    %v1601 = vmul.f32 %v1537, %v1217
    %v1602 = vmul.f32 %v1538, %v1218
    %p1603 = scmp.eq.s32.totalorder 0, 0
    // Predicated region
    $region18: #{tpu_custom_call.1} parent=1 // pred_check
      %p1604 = pneg %p1603
    $region19: #{tpu_custom_call.1} parent=1 // pred_check_branch
      %1606 = sbr.rel (%p1604) target = $region21
    $region20: #{tpu_custom_call.1} parent=1 // pred_region
      %s1607 = scalar_lea.smem [#allocation2], 0
      %1608 = sst [smem:[%s1607]] 0.0
    $region21: #{tpu_custom_call.1} parent=1 // pred_fallthru
      _
    %s1609 = sld [smem:[#allocation2]]
    %v1610 = vadd.f32 %v1539, %v1540
    %v1611 = vadd.f32 %v1610, %v1541
    %v1612 = vadd.f32 %v1611, %v1542
    %v1613 = vadd.f32 %v1612, %v1543
    %v1614 = vadd.f32 %v1613, %v1544
    %v1615 = vadd.f32 %v1614, %v1545
    %v1616 = vadd.f32 %v1615, %v1546
    %v1617 = vadd.f32 %v1616, %v1547
    %v1618 = vadd.f32 %v1617, %v1548
    %v1619 = vadd.f32 %v1618, %v1549
    %v1620 = vadd.f32 %v1619, %v1550
    %v1621 = vadd.f32 %v1620, %v1551
    %v1622 = vadd.f32 %v1621, %v1552
    %v1623 = vadd.f32 %v1622, %v1553
    %v1624 = vadd.f32 %v1623, %v1554
    %v1625 = vadd.f32 %v1624, %v1555
    %v1626 = vadd.f32 %v1625, %v1556
    %v1627 = vadd.f32 %v1626, %v1557
    %v1628 = vadd.f32 %v1627, %v1558
    %v1629 = vadd.f32 %v1628, %v1559
    %v1630 = vadd.f32 %v1629, %v1560
    %v1631 = vadd.f32 %v1630, %v1561
    %v1632 = vadd.f32 %v1631, %v1562
    %v1633 = vadd.f32 %v1632, %v1563
    %v1634 = vadd.f32 %v1633, %v1564
    %v1635 = vadd.f32 %v1634, %v1565
    %v1636 = vadd.f32 %v1635, %v1566
    %v1637 = vadd.f32 %v1636, %v1567
    %v1638 = vadd.f32 %v1637, %v1568
    %v1639 = vadd.f32 %v1638, %v1569
    %v1640 = vadd.f32 %v1639, %v1570
    %v1641 = vadd.f32 %v1640, %v1571
    %v1642 = vadd.f32 %v1641, %v1572
    %v1643 = vadd.f32 %v1642, %v1573
    %v1644 = vadd.f32 %v1643, %v1574
    %v1645 = vadd.f32 %v1644, %v1575
    %v1646 = vadd.f32 %v1645, %v1576
    %v1647 = vadd.f32 %v1646, %v1577
    %v1648 = vadd.f32 %v1647, %v1578
    %v1649 = vadd.f32 %v1648, %v1579
    %v1650 = vadd.f32 %v1649, %v1580
    %v1651 = vadd.f32 %v1650, %v1581
    %v1652 = vadd.f32 %v1651, %v1582
    %v1653 = vadd.f32 %v1652, %v1583
    %v1654 = vadd.f32 %v1653, %v1584
    %v1655 = vadd.f32 %v1654, %v1585
    %v1656 = vadd.f32 %v1655, %v1586
    %v1657 = vadd.f32 %v1656, %v1587
    %v1658 = vadd.f32 %v1657, %v1588
    %v1659 = vadd.f32 %v1658, %v1589
    %v1660 = vadd.f32 %v1659, %v1590
    %v1661 = vadd.f32 %v1660, %v1591
    %v1662 = vadd.f32 %v1661, %v1592
    %v1663 = vadd.f32 %v1662, %v1593
    %v1664 = vadd.f32 %v1663, %v1594
    %v1665 = vadd.f32 %v1664, %v1595
    %v1666 = vadd.f32 %v1665, %v1596
    %v1667 = vadd.f32 %v1666, %v1597
    %v1668 = vadd.f32 %v1667, %v1598
    %v1669 = vadd.f32 %v1668, %v1599
    %v1670 = vadd.f32 %v1669, %v1600
    %v1671 = vadd.f32 %v1670, %v1601
    %v1672 = vadd.f32 %v1671, %v1602
    %1673 = vadd.xlane.f32.xlu0 %v1672
    %v1674 = vpop.xlane.xlu0 %1673
    %v1675 = vrot.slane %v1674, 4
    %v1676 = vadd.f32 %v1674, %v1675
    %v1677 = vrot.slane %v1676, 2
    %v1678 = vadd.f32 %v1676, %v1677
    %v1679 = vrot.slane %v1678, 1
    %v1680 = vadd.f32 %v1678, %v1679
    %s1681 = vtos %v1680
    %s1682 = sadd.f32 %s1609, %s1681
    %s1683 = scalar_lea.smem [#allocation2], 0
    %1684 = sst [smem:[%s1683]] %s1682
    // Predicated region
    $region22: #{tpu_custom_call.1} parent=1 // pred_check
      %p1685 = pneg %p1603
    $region23: #{tpu_custom_call.1} parent=1 // pred_check_branch
      %1687 = sbr.rel (%p1685) target = $region25
    $region24: #{tpu_custom_call.1} parent=1 // pred_region
      %s1688 = sld [smem:[#allocation2]]
      %s1689 = scalar_lea.smem [#allocation8], 0
      %1690 = sst [smem:[%s1689]] %s1688
    $region25: #{tpu_custom_call.1} parent=1 // pred_fallthru
      _
    // Predicated region
    $region26: #{tpu_custom_call.1} parent=1 // pred_check
      _
    $region27: #{tpu_custom_call.1} parent=1 // pred_check_branch
      %1692 = sbr.rel (0) target = $region29
    $region28: #{tpu_custom_call.1} parent=1 // pred_region
      %s1694 = ssub.s32 16, 16
      %1695 = vsyncadd [#allocation5], %s1694
      %1698 = dma.smem_to_hbm [#allocation8], 16, %s2, [#allocation5]
    $region29: #{tpu_custom_call.1} parent=1 // pred_fallthru
      _
    // Predicated region
    $region30: #{tpu_custom_call.1} parent=1 // pred_check
      _
    $region31: #{tpu_custom_call.1} parent=1 // pred_check_branch
      %1700 = sbr.rel (0) target = $region33
    $region32: #{tpu_custom_call.1} parent=1 // pred_region
      %1701 = dma.done [#allocation5], 16
    $region33: #{tpu_custom_call.1} parent=1 // pred_fallthru
      _
    %1702 = sfence
    %1703 = vsyncpa [#allocation4], 1
    %1704 = vsyncpa [#allocation7], 1
    %1705 = vsyncpa [#allocation5], 1

</llo_original>
